<compile_context>
chip_gen: v7x
topology: tpu7x:2x2x1
jax: 0.10.0
libtpu: 0.0.40
codegen_flags: <defaults>
</compile_context>

<pallas_src>
import functools
import math

import jax
import jax.numpy as jnp
from jax.experimental import pallas as pl
from jax.experimental.pallas import tpu as pltpu

F32 = jnp.float32
BF16 = jnp.bfloat16
NEG_INF = -1e30


def _layernorm(v, g, b, eps=1e-5):
    mu = jnp.mean(v, axis=-1, keepdims=True)
    var = jnp.mean((v - mu) ** 2, axis=-1, keepdims=True)
    return (v - mu) * jax.lax.rsqrt(var + eps) * g + b


def _pick_tile(n, target):
    """Largest legal tile: `target` if it divides n, else the full dim."""
    if n <= target:
        return n
    return target if n % target == 0 else n


# ----------------------------------------------------------------------------
# Kernel 1: pre-norm + QKV projections, row-tiled over flattened (B*S, D).
# ----------------------------------------------------------------------------
def _qkv_kernel(scale, x_ref, g_ref, b_ref, wq_ref, bq_ref, wk_ref, bk_ref,
                wv_ref, bv_ref, q_ref, k_ref, v_ref):
    z = _layernorm(x_ref[...], g_ref[...], b_ref[...])          # f32
    zb = z.astype(BF16)                                          # bf16 for MXU
    q = jnp.dot(zb, wq_ref[...], preferred_element_type=F32) + bq_ref[...]
    k = jnp.dot(zb, wk_ref[...], preferred_element_type=F32) + bk_ref[...]
    v = jnp.dot(zb, wv_ref[...], preferred_element_type=F32) + bv_ref[...]
    q_ref[...] = (q * scale).astype(BF16)   # fold 1/sqrt(d_k) into q (O(S*D))
    k_ref[...] = k.astype(BF16)
    v_ref[...] = v.astype(BF16)


def _qkv_pallas(x_flat, lp, scale):
    N, D = x_flat.shape
    rt = _pick_tile(N, 256)

    row = pl.BlockSpec((rt, D), lambda i: (i, 0))
    vec = pl.BlockSpec((1, D), lambda i: (0, 0))
    mat = pl.BlockSpec((D, D), lambda i: (0, 0))
    out_sds = jax.ShapeDtypeStruct((N, D), BF16)

    return pl.pallas_call(
        functools.partial(_qkv_kernel, scale),
        out_shape=(out_sds, out_sds, out_sds),
        grid=(N // rt,),
        in_specs=[row, vec, vec, mat, vec, mat, vec, mat, vec],
        out_specs=(row, row, row),
        compiler_params=pltpu.CompilerParams(dimension_semantics=("parallel",)),
    )(x_flat, lp["ln1_g"], lp["ln1_b"],
      lp["wq"].astype(BF16), lp["bq"],
      lp["wk"].astype(BF16), lp["bk"],
      lp["wv"].astype(BF16), lp["bv"])


# ----------------------------------------------------------------------------
# Kernel 2: attention core, one (batch, head) per grid step. Additive bias,
# f32 scores/softmax, bf16 matmul operands, reciprocal on the EUP.
# ----------------------------------------------------------------------------
# TODO(synk): for long sequences switch to an online-softmax (flash) loop over
# KV tiles so VMEM is O(q_tile * kv_tile) instead of O(S^2).
def _attn_kernel(q_ref, k_ref, v_ref, bias_ref, o_ref):
    q = q_ref[0]                                                 # (S, d_k) bf16
    k = k_ref[0]
    v = v_ref[0]
    s = jax.lax.dot_general(q, k, (((1,), (1,)), ((), ())),
                            preferred_element_type=F32)          # (S, S) f32
    s = s + bias_ref[...]                                        # additive mask
    m = jnp.max(s, axis=-1, keepdims=True)
    p = jnp.exp(s - m)
    l = jnp.sum(p, axis=-1, keepdims=True)
    o = jnp.dot(p.astype(BF16), v, preferred_element_type=F32)   # (S, d_k) f32
    o = o * pl.reciprocal(l, approx=True)                        # divide on EUP
    o_ref[0] = o.astype(BF16)


def _attention_pallas(qh, kh, vh, bias):
    G, S, d_k = qh.shape
    head = pl.BlockSpec((1, S, d_k), lambda g: (g, 0, 0))
    return pl.pallas_call(
        _attn_kernel,
        out_shape=jax.ShapeDtypeStruct((G, S, d_k), BF16),
        grid=(G,),
        in_specs=[head, head, head, pl.BlockSpec((S, S), lambda g: (0, 0))],
        out_specs=head,
        compiler_params=pltpu.CompilerParams(dimension_semantics=("parallel",)),
    )(qh, kh, vh, bias)


# ----------------------------------------------------------------------------
# Kernel 3: out-projection + residual + pre-norm FFN (+ optional fused final
# LayerNorm). Grid = (row tiles, d_ff tiles); w1/w2 streamed per d_ff tile and
# accumulated into the resident f32 output block.
# ----------------------------------------------------------------------------
def _make_proj_ffn_kernel(apply_final_ln, double_residual):
    def kernel(x_ref, attn_ref, wo_ref, bo_ref, g2_ref, b2_ref,
               w1_ref, c1_ref, w2_ref, c2_ref, *rest):
        if apply_final_ln:
            gf_ref, bf_ref, o_ref, z_s = rest
        else:
            o_ref, z_s = rest

        j = pl.program_id(1)

        @pl.when(j == 0)
        def _():
            attn_o = jnp.dot(attn_ref[...], wo_ref[...],
                             preferred_element_type=F32) + bo_ref[...]
            xnew = x_ref[...] + attn_o            # residual after self-attn
            if double_residual:
                # Faithful to the reference: src_attn output is discarded and
                # the residual adds dropout(x) (identity at eval) => x doubles.
                xnew = xnew + xnew
            z_s[...] = _layernorm(xnew, g2_ref[...], b2_ref[...]).astype(BF16)
            o_ref[...] = xnew + c2_ref[...]       # init acc: residual + 2nd bias

        h1 = jnp.dot(z_s[...], w1_ref[...],
                     preferred_element_type=F32) + c1_ref[...]
        h1 = jnp.maximum(h1, 0.0)                 # ReLU (f32)
        o_ref[...] += jnp.dot(h1.astype(BF16), w2_ref[...],
                              preferred_element_type=F32)

        if apply_final_ln:
            @pl.when(j == pl.num_programs(1) - 1)
            def _():
                o_ref[...] = _layernorm(o_ref[...], gf_ref[...], bf_ref[...])

    return kernel


def _proj_ffn_pallas(x_flat, attn_flat, lp, final_ln=None, double_residual=False):
    N, D = x_flat.shape
    d_ff = lp["w1"].shape[1]
    rt = _pick_tile(N, 256)
    ft = _pick_tile(d_ff, 512)

    kernel = _make_proj_ffn_kernel(final_ln is not None, double_residual)

    row = pl.BlockSpec((rt, D), lambda i, j: (i, 0))
    vecD = pl.BlockSpec((1, D), lambda i, j: (0, 0))
    matDD = pl.BlockSpec((D, D), lambda i, j: (0, 0))
    w1_spec = pl.BlockSpec((D, ft), lambda i, j: (0, j))
    c1_spec = pl.BlockSpec((1, ft), lambda i, j: (0, j))
    w2_spec = pl.BlockSpec((ft, D), lambda i, j: (j, 0))

    in_specs = [row, row, matDD, vecD, vecD, vecD,
                w1_spec, c1_spec, w2_spec, vecD]
    args = [x_flat, attn_flat,
            lp["wo"].astype(BF16), lp["bo"], lp["ln2_g"], lp["ln2_b"],
            lp["w1"].astype(BF16), lp["c1"], lp["w2"].astype(BF16), lp["c2"]]
    if final_ln is not None:
        in_specs += [vecD, vecD]
        args += [final_ln[0], final_ln[1]]

    return pl.pallas_call(
        kernel,
        out_shape=jax.ShapeDtypeStruct((N, D), F32),
        grid=(N // rt, d_ff // ft),
        in_specs=in_specs,
        out_specs=pl.BlockSpec((rt, D), lambda i, j: (i, 0)),
        scratch_shapes=[pltpu.VMEM((rt, D), BF16)],   # LN(x_post_attn) in bf16
        compiler_params=pltpu.CompilerParams(
            dimension_semantics=("parallel", "arbitrary")),
    )(*args)


# ----------------------------------------------------------------------------
# Standalone final LN (only used if n_layers == 0; otherwise fused above).
# ----------------------------------------------------------------------------
def _ln_kernel(x_ref, g_ref, b_ref, o_ref):
    o_ref[...] = _layernorm(x_ref[...], g_ref[...], b_ref[...])


def final_layernorm_pallas(x_flat, g, b):
    N, D = x_flat.shape
    rt = _pick_tile(N, 256)
    return pl.pallas_call(
        _ln_kernel,
        out_shape=jax.ShapeDtypeStruct((N, D), F32),
        grid=(N // rt,),
        in_specs=[pl.BlockSpec((rt, D), lambda i: (i, 0)),
                  pl.BlockSpec((1, D), lambda i: (0, 0)),
                  pl.BlockSpec((1, D), lambda i: (0, 0))],
        out_specs=pl.BlockSpec((rt, D), lambda i: (i, 0)),
        compiler_params=pltpu.CompilerParams(dimension_semantics=("parallel",)),
    )(x_flat, g, b)


# ----------------------------------------------------------------------------
# Layer / decoder wrappers
# ----------------------------------------------------------------------------
def transformer_layer_pallas(x_flat, bias, lp, B, S, num_heads,
                             final_ln=None, double_residual=False):
    N, D = x_flat.shape
    d_k = D // num_heads
    scale = 1.0 / math.sqrt(d_k)

    q, k, v = _qkv_pallas(x_flat, lp, scale)          # (N, D) bf16 each

    def to_heads(t):
        return (t.reshape(B, S, num_heads, d_k)
                 .transpose(0, 2, 1, 3)
                 .reshape(B * num_heads, S, d_k))

    attn = _attention_pallas(to_heads(q), to_heads(k), to_heads(v), bias)
    attn = (attn.reshape(B, num_heads, S, d_k)
                .transpose(0, 2, 1, 3)
                .reshape(N, D))                       # (N, D) bf16

    return _proj_ffn_pallas(x_flat, attn, lp,
                            final_ln=final_ln, double_residual=double_residual)


def init_decoder_params(key, n_layers, d_model, d_ff):
    """Deterministic synthetic parameter init (not a checkpoint load)."""
    def dense(k, din, dout):
        return jax.random.normal(k, (din, dout), F32) / math.sqrt(din)

    layers = []
    for i in range(n_layers):
        k = jax.random.fold_in(key, i)
        ks = jax.random.split(k, 6)
        layers.append(dict(
            ln1_g=jnp.ones((1, d_model), F32), ln1_b=jnp.zeros((1, d_model), F32),
            wq=dense(ks[0], d_model, d_model), bq=jnp.zeros((1, d_model), F32),
            wk=dense(ks[1], d_model, d_model), bk=jnp.zeros((1, d_model), F32),
            wv=dense(ks[2], d_model, d_model), bv=jnp.zeros((1, d_model), F32),
            wo=dense(ks[3], d_model, d_model), bo=jnp.zeros((1, d_model), F32),
            ln2_g=jnp.ones((1, d_model), F32), ln2_b=jnp.zeros((1, d_model), F32),
            w1=dense(ks[4], d_model, d_ff), c1=jnp.zeros((1, d_ff), F32),
            w2=dense(ks[5], d_ff, d_model), c2=jnp.zeros((1, d_model), F32),
        ))
    return dict(layers=layers,
                norm_g=jnp.ones((1, d_model), F32),
                norm_b=jnp.zeros((1, d_model), F32))


def decoder_forward(x, params, num_heads, memory=None, src_mask=None, tgt_mask=None):
    B, S, D = x.shape
    # Pre-bake the mask as a single additive bias (0 keep / -1e30 masked).
    bias = (jnp.zeros((S, S), F32) if tgt_mask is None
            else jnp.where(tgt_mask.astype(F32) > 0, 0.0, NEG_INF).astype(F32))
    # TODO(synk): the reference's src_attn output is discarded (upstream bug);
    # when memory is not None the net effect is x = x + x, reproduced via
    # `double_residual` — memory/src_mask values are never actually read.
    double_residual = memory is not None

    x_flat = x.reshape(B * S, D)
    n_layers = len(params["layers"])
    for li, lp in enumerate(params["layers"]):
        final_ln = ((params["norm_g"], params["norm_b"])
                    if li == n_layers - 1 else None)      # fuse final LN
        x_flat = transformer_layer_pallas(x_flat, bias, lp, B, S, num_heads,
                                          final_ln=final_ln,
                                          double_residual=double_residual)
    if n_layers == 0:
        x_flat = final_layernorm_pallas(x_flat, params["norm_g"], params["norm_b"])
    return x_flat.reshape(B, S, D)


if __name__ == "__main__":
    B, S, D, H, DFF, N_LAYERS = 2, 8, 32, 4, 64, 2

    key = jax.random.PRNGKey(0)
    kx, kp = jax.random.split(key)
    x = jax.random.normal(kx, (B, S, D), F32)
    params = init_decoder_params(kp, N_LAYERS, D, DFF)

    # Causal target mask, as a decoder would use (1.0 = attend, 0.0 = masked).
    tgt_mask = jnp.tril(jnp.ones((S, S), F32))

    fwd = jax.jit(functools.partial(decoder_forward, num_heads=H))
    out = fwd(x, params, tgt_mask=tgt_mask)
    out = jax.block_until_ready(out)

    assert out.shape == (B, S, D) and out.dtype == F32
    assert bool(jnp.all(jnp.isfinite(out)))
    print("KERNEL_OK")
</pallas_src>

<mosaic_0001>
module attributes {stable_mosaic.version = 11 : i64} {
  func.func @_qkv_kernel(%arg0: i32, %arg1: memref<16x32xf32, #tpu.memory_space<vmem>>, %arg2: memref<1x32xf32, #tpu.memory_space<vmem>>, %arg3: memref<1x32xf32, #tpu.memory_space<vmem>>, %arg4: memref<32x32xbf16, #tpu.memory_space<vmem>>, %arg5: memref<1x32xf32, #tpu.memory_space<vmem>>, %arg6: memref<32x32xbf16, #tpu.memory_space<vmem>>, %arg7: memref<1x32xf32, #tpu.memory_space<vmem>>, %arg8: memref<32x32xbf16, #tpu.memory_space<vmem>>, %arg9: memref<1x32xf32, #tpu.memory_space<vmem>>, %arg10: memref<16x32xbf16, #tpu.memory_space<vmem>>, %arg11: memref<16x32xbf16, #tpu.memory_space<vmem>>, %arg12: memref<16x32xbf16, #tpu.memory_space<vmem>>) attributes {dimension_semantics = [#tpu.dimension_semantics<parallel>], iteration_bounds = array<i64: 1>, scalar_prefetch = 0 : i64, scratch_operands = 0 : i64, tpu.core_type = #tpu.core_type<tc>, window_params = [{transform_indices = @transform_0, window_bounds = array<i64: 16, 32>}, {pipeline_mode = #tpu.pipeline_mode<synchronous>, transform_indices = @transform_1, window_bounds = array<i64: 1, 32>}, {pipeline_mode = #tpu.pipeline_mode<synchronous>, transform_indices = @transform_2, window_bounds = array<i64: 1, 32>}, {pipeline_mode = #tpu.pipeline_mode<synchronous>, transform_indices = @transform_3, window_bounds = array<i64: 32, 32>}, {pipeline_mode = #tpu.pipeline_mode<synchronous>, transform_indices = @transform_4, window_bounds = array<i64: 1, 32>}, {pipeline_mode = #tpu.pipeline_mode<synchronous>, transform_indices = @transform_5, window_bounds = array<i64: 32, 32>}, {pipeline_mode = #tpu.pipeline_mode<synchronous>, transform_indices = @transform_6, window_bounds = array<i64: 1, 32>}, {pipeline_mode = #tpu.pipeline_mode<synchronous>, transform_indices = @transform_7, window_bounds = array<i64: 32, 32>}, {pipeline_mode = #tpu.pipeline_mode<synchronous>, transform_indices = @transform_8, window_bounds = array<i64: 1, 32>}, {transform_indices = @transform_9, window_bounds = array<i64: 16, 32>}, {transform_indices = @transform_10, window_bounds = array<i64: 16, 32>}, {transform_indices = @transform_11, window_bounds = array<i64: 16, 32>}]} {
    %c0 = arith.constant 0 : index
    %c0_0 = arith.constant 0 : index
    %0 = vector.load %arg1[%c0, %c0_0] : memref<16x32xf32, #tpu.memory_space<vmem>>, vector<16x32xf32>
    %c0_1 = arith.constant 0 : index
    %c0_2 = arith.constant 0 : index
    %1 = vector.load %arg2[%c0_1, %c0_2] : memref<1x32xf32, #tpu.memory_space<vmem>>, vector<1x32xf32>
    %c0_3 = arith.constant 0 : index
    %c0_4 = arith.constant 0 : index
    %2 = vector.load %arg3[%c0_3, %c0_4] : memref<1x32xf32, #tpu.memory_space<vmem>>, vector<1x32xf32>
    %cst = arith.constant dense<0.000000e+00> : vector<16xf32>
    %3 = vector.multi_reduction <add>, %0, %cst [1] : vector<16x32xf32> to vector<16xf32>
    %4 = vector.shape_cast %3 : vector<16xf32> to vector<16x1xf32>
    %cst_5 = arith.constant 3.200000e+01 : f32
    %5 = vector.broadcast %cst_5 : f32 to vector<16x1xf32>
    %6 = arith.divf %4, %5 : vector<16x1xf32>
    %7 = vector.broadcast %6 : vector<16x1xf32> to vector<16x32xf32>
    %8 = arith.subf %0, %7 : vector<16x32xf32>
    %9 = arith.mulf %8, %8 : vector<16x32xf32>
    %cst_6 = arith.constant dense<0.000000e+00> : vector<16xf32>
    %10 = vector.multi_reduction <add>, %9, %cst_6 [1] : vector<16x32xf32> to vector<16xf32>
    %11 = vector.shape_cast %10 : vector<16xf32> to vector<16x1xf32>
    %cst_7 = arith.constant 3.200000e+01 : f32
    %12 = vector.broadcast %cst_7 : f32 to vector<16x1xf32>
    %13 = arith.divf %11, %12 : vector<16x1xf32>
    %14 = vector.broadcast %6 : vector<16x1xf32> to vector<16x32xf32>
    %15 = arith.subf %0, %14 : vector<16x32xf32>
    %cst_8 = arith.constant 9.99999974E-6 : f32
    %16 = vector.broadcast %cst_8 : f32 to vector<16x1xf32>
    %17 = arith.addf %13, %16 : vector<16x1xf32>
    %18 = math.rsqrt %17 : vector<16x1xf32>
    %19 = vector.broadcast %18 : vector<16x1xf32> to vector<16x32xf32>
    %20 = arith.mulf %15, %19 : vector<16x32xf32>
    %21 = vector.broadcast %1 : vector<1x32xf32> to vector<16x32xf32>
    %22 = arith.mulf %20, %21 : vector<16x32xf32>
    %23 = vector.broadcast %2 : vector<1x32xf32> to vector<16x32xf32>
    %24 = arith.addf %22, %23 : vector<16x32xf32>
    %25 = arith.truncf %24 : vector<16x32xf32> to vector<16x32xbf16>
    %c0_9 = arith.constant 0 : index
    %c0_10 = arith.constant 0 : index
    %26 = vector.load %arg4[%c0_9, %c0_10] : memref<32x32xbf16, #tpu.memory_space<vmem>>, vector<32x32xbf16>
    %cst_11 = arith.constant dense<0.000000e+00> : vector<16x32xf32>
    %27 = tpu.matmul %25, %26, %cst_11 {dimension_numbers = #tpu.dot_dimension_numbers<[1], [0], [0], [1], [0, 0, 1, 1], [], []>} : vector<16x32xbf16>, vector<32x32xbf16>, vector<16x32xf32> -> vector<16x32xf32>
    %c0_12 = arith.constant 0 : index
    %c0_13 = arith.constant 0 : index
    %28 = vector.load %arg5[%c0_12, %c0_13] : memref<1x32xf32, #tpu.memory_space<vmem>>, vector<1x32xf32>
    %29 = vector.broadcast %28 : vector<1x32xf32> to vector<16x32xf32>
    %30 = arith.addf %27, %29 : vector<16x32xf32>
    %c0_14 = arith.constant 0 : index
    %c0_15 = arith.constant 0 : index
    %31 = vector.load %arg6[%c0_14, %c0_15] : memref<32x32xbf16, #tpu.memory_space<vmem>>, vector<32x32xbf16>
    %cst_16 = arith.constant dense<0.000000e+00> : vector<16x32xf32>
    %32 = tpu.matmul %25, %31, %cst_16 {dimension_numbers = #tpu.dot_dimension_numbers<[1], [0], [0], [1], [0, 0, 1, 1], [], []>} : vector<16x32xbf16>, vector<32x32xbf16>, vector<16x32xf32> -> vector<16x32xf32>
    %c0_17 = arith.constant 0 : index
    %c0_18 = arith.constant 0 : index
    %33 = vector.load %arg7[%c0_17, %c0_18] : memref<1x32xf32, #tpu.memory_space<vmem>>, vector<1x32xf32>
    %34 = vector.broadcast %33 : vector<1x32xf32> to vector<16x32xf32>
    %35 = arith.addf %32, %34 : vector<16x32xf32>
    %c0_19 = arith.constant 0 : index
    %c0_20 = arith.constant 0 : index
    %36 = vector.load %arg8[%c0_19, %c0_20] : memref<32x32xbf16, #tpu.memory_space<vmem>>, vector<32x32xbf16>
    %cst_21 = arith.constant dense<0.000000e+00> : vector<16x32xf32>
    %37 = tpu.matmul %25, %36, %cst_21 {dimension_numbers = #tpu.dot_dimension_numbers<[1], [0], [0], [1], [0, 0, 1, 1], [], []>} : vector<16x32xbf16>, vector<32x32xbf16>, vector<16x32xf32> -> vector<16x32xf32>
    %c0_22 = arith.constant 0 : index
    %c0_23 = arith.constant 0 : index
    %38 = vector.load %arg9[%c0_22, %c0_23] : memref<1x32xf32, #tpu.memory_space<vmem>>, vector<1x32xf32>
    %39 = vector.broadcast %38 : vector<1x32xf32> to vector<16x32xf32>
    %40 = arith.addf %37, %39 : vector<16x32xf32>
    %cst_24 = arith.constant 0.353553385 : f32
    %41 = vector.broadcast %cst_24 : f32 to vector<16x32xf32>
    %42 = arith.mulf %30, %41 : vector<16x32xf32>
    %43 = arith.truncf %42 : vector<16x32xf32> to vector<16x32xbf16>
    %c0_25 = arith.constant 0 : index
    %c0_26 = arith.constant 0 : index
    %44 = vector.load %arg10[%c0_25, %c0_26] : memref<16x32xbf16, #tpu.memory_space<vmem>>, vector<16x32xbf16>
    tpu.vector_store %arg10[%c0_25, %c0_26], %43 {strides = array<i32>} : memref<16x32xbf16, #tpu.memory_space<vmem>>, vector<16x32xbf16>,
    %45 = arith.truncf %35 : vector<16x32xf32> to vector<16x32xbf16>
    %c0_27 = arith.constant 0 : index
    %c0_28 = arith.constant 0 : index
    %46 = vector.load %arg11[%c0_27, %c0_28] : memref<16x32xbf16, #tpu.memory_space<vmem>>, vector<16x32xbf16>
    tpu.vector_store %arg11[%c0_27, %c0_28], %45 {strides = array<i32>} : memref<16x32xbf16, #tpu.memory_space<vmem>>, vector<16x32xbf16>,
    %47 = arith.truncf %40 : vector<16x32xf32> to vector<16x32xbf16>
    %c0_29 = arith.constant 0 : index
    %c0_30 = arith.constant 0 : index
    %48 = vector.load %arg12[%c0_29, %c0_30] : memref<16x32xbf16, #tpu.memory_space<vmem>>, vector<16x32xbf16>
    tpu.vector_store %arg12[%c0_29, %c0_30], %47 {strides = array<i32>} : memref<16x32xbf16, #tpu.memory_space<vmem>>, vector<16x32xbf16>,
    return
  }
  func.func @transform_0(%arg0: i32) -> (i32, i32) {
    %c0_i32 = arith.constant 0 : i32
    %c0_i32_0 = arith.constant 0 : i32
    return %arg0, %c0_i32 : i32, i32
  }
  func.func @transform_1(%arg0: i32) -> (i32, i32) {
    %c0_i32 = arith.constant 0 : i32
    %c0_i32_0 = arith.constant 0 : i32
    %c0_i32_1 = arith.constant 0 : i32
    return %c0_i32, %c0_i32_0 : i32, i32
  }
  func.func @transform_2(%arg0: i32) -> (i32, i32) {
    %c0_i32 = arith.constant 0 : i32
    %c0_i32_0 = arith.constant 0 : i32
    %c0_i32_1 = arith.constant 0 : i32
    return %c0_i32, %c0_i32_0 : i32, i32
  }
  func.func @transform_3(%arg0: i32) -> (i32, i32) {
    %c0_i32 = arith.constant 0 : i32
    %c0_i32_0 = arith.constant 0 : i32
    %c0_i32_1 = arith.constant 0 : i32
    return %c0_i32, %c0_i32_0 : i32, i32
  }
  func.func @transform_4(%arg0: i32) -> (i32, i32) {
    %c0_i32 = arith.constant 0 : i32
    %c0_i32_0 = arith.constant 0 : i32
    %c0_i32_1 = arith.constant 0 : i32
    return %c0_i32, %c0_i32_0 : i32, i32
  }
  func.func @transform_5(%arg0: i32) -> (i32, i32) {
    %c0_i32 = arith.constant 0 : i32
    %c0_i32_0 = arith.constant 0 : i32
    %c0_i32_1 = arith.constant 0 : i32
    return %c0_i32, %c0_i32_0 : i32, i32
  }
  func.func @transform_6(%arg0: i32) -> (i32, i32) {
    %c0_i32 = arith.constant 0 : i32
    %c0_i32_0 = arith.constant 0 : i32
    %c0_i32_1 = arith.constant 0 : i32
    return %c0_i32, %c0_i32_0 : i32, i32
  }
  func.func @transform_7(%arg0: i32) -> (i32, i32) {
    %c0_i32 = arith.constant 0 : i32
    %c0_i32_0 = arith.constant 0 : i32
    %c0_i32_1 = arith.constant 0 : i32
    return %c0_i32, %c0_i32_0 : i32, i32
  }
  func.func @transform_8(%arg0: i32) -> (i32, i32) {
    %c0_i32 = arith.constant 0 : i32
    %c0_i32_0 = arith.constant 0 : i32
    %c0_i32_1 = arith.constant 0 : i32
    return %c0_i32, %c0_i32_0 : i32, i32
  }
  func.func @transform_9(%arg0: i32) -> (i32, i32) {
    %c0_i32 = arith.constant 0 : i32
    %c0_i32_0 = arith.constant 0 : i32
    return %arg0, %c0_i32 : i32, i32
  }
  func.func @transform_10(%arg0: i32) -> (i32, i32) {
    %c0_i32 = arith.constant 0 : i32
    %c0_i32_0 = arith.constant 0 : i32
    return %arg0, %c0_i32 : i32, i32
  }
  func.func @transform_11(%arg0: i32) -> (i32, i32) {
    %c0_i32 = arith.constant 0 : i32
    %c0_i32_0 = arith.constant 0 : i32
    return %arg0, %c0_i32 : i32, i32
  }
}

module attributes {stable_mosaic.version = 11 : i64} {
  func.func @_attn_kernel(%arg0: i32, %arg1: memref<1x8x8xbf16, #tpu.memory_space<vmem>>, %arg2: memref<1x8x8xbf16, #tpu.memory_space<vmem>>, %arg3: memref<1x8x8xbf16, #tpu.memory_space<vmem>>, %arg4: memref<8x8xf32, #tpu.memory_space<vmem>>, %arg5: memref<1x8x8xbf16, #tpu.memory_space<vmem>>) attributes {dimension_semantics = [#tpu.dimension_semantics<parallel>], iteration_bounds = array<i64: 8>, scalar_prefetch = 0 : i64, scratch_operands = 0 : i64, tpu.core_type = #tpu.core_type<tc>, window_params = [{transform_indices = @transform_0, window_bounds = array<i64: 1, 8, 8>}, {transform_indices = @transform_1, window_bounds = array<i64: 1, 8, 8>}, {transform_indices = @transform_2, window_bounds = array<i64: 1, 8, 8>}, {pipeline_mode = #tpu.pipeline_mode<synchronous>, transform_indices = @transform_3, window_bounds = array<i64: 8, 8>}, {transform_indices = @transform_4, window_bounds = array<i64: 1, 8, 8>}]} {
    %c0 = arith.constant 0 : index
    %c0_0 = arith.constant 0 : index
    %c0_1 = arith.constant 0 : index
    %0 = vector.load %arg1[%c0, %c0_0, %c0_1] : memref<1x8x8xbf16, #tpu.memory_space<vmem>>, vector<1x8x8xbf16>
    %1 = vector.shape_cast %0 : vector<1x8x8xbf16> to vector<8x8xbf16>
    %c0_2 = arith.constant 0 : index
    %c0_3 = arith.constant 0 : index
    %c0_4 = arith.constant 0 : index
    %2 = vector.load %arg2[%c0_2, %c0_3, %c0_4] : memref<1x8x8xbf16, #tpu.memory_space<vmem>>, vector<1x8x8xbf16>
    %3 = vector.shape_cast %2 : vector<1x8x8xbf16> to vector<8x8xbf16>
    %c0_5 = arith.constant 0 : index
    %c0_6 = arith.constant 0 : index
    %c0_7 = arith.constant 0 : index
    %4 = vector.load %arg3[%c0_5, %c0_6, %c0_7] : memref<1x8x8xbf16, #tpu.memory_space<vmem>>, vector<1x8x8xbf16>
    %5 = vector.shape_cast %4 : vector<1x8x8xbf16> to vector<8x8xbf16>
    %cst = arith.constant dense<0.000000e+00> : vector<8x8xf32>
    %6 = tpu.matmul %1, %3, %cst {dimension_numbers = #tpu.dot_dimension_numbers<[1], [1], [0], [0], [0, 0, 1, 0], [], []>} : vector<8x8xbf16>, vector<8x8xbf16>, vector<8x8xf32> -> vector<8x8xf32>
    %c0_8 = arith.constant 0 : index
    %c0_9 = arith.constant 0 : index
    %7 = vector.load %arg4[%c0_8, %c0_9] : memref<8x8xf32, #tpu.memory_space<vmem>>, vector<8x8xf32>
    %8 = arith.addf %6, %7 : vector<8x8xf32>
    %cst_10 = arith.constant dense<0xFF800000> : vector<8xf32>
    %9 = vector.multi_reduction <maximumf>, %8, %cst_10 [1] : vector<8x8xf32> to vector<8xf32>
    %10 = vector.shape_cast %9 : vector<8xf32> to vector<8x1xf32>
    %11 = vector.broadcast %10 : vector<8x1xf32> to vector<8x8xf32>
    %12 = arith.subf %8, %11 : vector<8x8xf32>
    %13 = math.exp %12 : vector<8x8xf32>
    %cst_11 = arith.constant dense<0.000000e+00> : vector<8xf32>
    %14 = vector.multi_reduction <add>, %13, %cst_11 [1] : vector<8x8xf32> to vector<8xf32>
    %15 = vector.shape_cast %14 : vector<8xf32> to vector<8x1xf32>
    %16 = arith.truncf %13 : vector<8x8xf32> to vector<8x8xbf16>
    %cst_12 = arith.constant dense<0.000000e+00> : vector<8x8xf32>
    %17 = tpu.matmul %16, %5, %cst_12 {dimension_numbers = #tpu.dot_dimension_numbers<[1], [0], [0], [1], [0, 0, 1, 1], [], []>} : vector<8x8xbf16>, vector<8x8xbf16>, vector<8x8xf32> -> vector<8x8xf32>
    %18 = tpu.reciprocal %15 {approx = true} : vector<8x1xf32> -> vector<8x1xf32>
    %19 = vector.broadcast %18 : vector<8x1xf32> to vector<8x8xf32>
    %20 = arith.mulf %17, %19 : vector<8x8xf32>
    %21 = arith.truncf %20 : vector<8x8xf32> to vector<8x8xbf16>
    %c0_13 = arith.constant 0 : index
    %c0_14 = arith.constant 0 : index
    %c0_15 = arith.constant 0 : index
    %22 = vector.load %arg5[%c0_13, %c0_14, %c0_15] : memref<1x8x8xbf16, #tpu.memory_space<vmem>>, vector<1x8x8xbf16>
    %23 = vector.shape_cast %22 : vector<1x8x8xbf16> to vector<8x8xbf16>
    %24 = vector.shape_cast %21 : vector<8x8xbf16> to vector<1x8x8xbf16>
    tpu.vector_store %arg5[%c0_13, %c0_14, %c0_15], %24 {strides = array<i32>} : memref<1x8x8xbf16, #tpu.memory_space<vmem>>, vector<1x8x8xbf16>,
    return
  }
  func.func @transform_0(%arg0: i32) -> (i32, i32, i32) {
    %c0_i32 = arith.constant 0 : i32
    %c0_i32_0 = arith.constant 0 : i32
    %c0_i32_1 = arith.constant 0 : i32
    return %arg0, %c0_i32, %c0_i32_0 : i32, i32, i32
  }
  func.func @transform_1(%arg0: i32) -> (i32, i32, i32) {
    %c0_i32 = arith.constant 0 : i32
    %c0_i32_0 = arith.constant 0 : i32
    %c0_i32_1 = arith.constant 0 : i32
    return %arg0, %c0_i32, %c0_i32_0 : i32, i32, i32
  }
  func.func @transform_2(%arg0: i32) -> (i32, i32, i32) {
    %c0_i32 = arith.constant 0 : i32
    %c0_i32_0 = arith.constant 0 : i32
    %c0_i32_1 = arith.constant 0 : i32
    return %arg0, %c0_i32, %c0_i32_0 : i32, i32, i32
  }
  func.func @transform_3(%arg0: i32) -> (i32, i32) {
    %c0_i32 = arith.constant 0 : i32
    %c0_i32_0 = arith.constant 0 : i32
    %c0_i32_1 = arith.constant 0 : i32
    return %c0_i32, %c0_i32_0 : i32, i32
  }
  func.func @transform_4(%arg0: i32) -> (i32, i32, i32) {
    %c0_i32 = arith.constant 0 : i32
    %c0_i32_0 = arith.constant 0 : i32
    %c0_i32_1 = arith.constant 0 : i32
    return %arg0, %c0_i32, %c0_i32_0 : i32, i32, i32
  }
}

module attributes {stable_mosaic.version = 11 : i64} {
  func.func @kernel(%arg0: i32, %arg1: i32, %arg2: memref<16x32xf32, #tpu.memory_space<vmem>>, %arg3: memref<16x32xbf16, #tpu.memory_space<vmem>>, %arg4: memref<32x32xbf16, #tpu.memory_space<vmem>>, %arg5: memref<1x32xf32, #tpu.memory_space<vmem>>, %arg6: memref<1x32xf32, #tpu.memory_space<vmem>>, %arg7: memref<1x32xf32, #tpu.memory_space<vmem>>, %arg8: memref<32x64xbf16, #tpu.memory_space<vmem>>, %arg9: memref<1x64xf32, #tpu.memory_space<vmem>>, %arg10: memref<64x32xbf16, #tpu.memory_space<vmem>>, %arg11: memref<1x32xf32, #tpu.memory_space<vmem>>, %arg12: memref<16x32xf32, #tpu.memory_space<vmem>>, %arg13: memref<16x32xbf16, #tpu.memory_space<vmem>>) attributes {dimension_semantics = [#tpu.dimension_semantics<parallel>, #tpu.dimension_semantics<arbitrary>], iteration_bounds = array<i64: 1, 1>, scalar_prefetch = 0 : i64, scratch_operands = 1 : i64, tpu.core_type = #tpu.core_type<tc>, window_params = [{transform_indices = @transform_0, window_bounds = array<i64: 16, 32>}, {transform_indices = @transform_1, window_bounds = array<i64: 16, 32>}, {pipeline_mode = #tpu.pipeline_mode<synchronous>, transform_indices = @transform_2, window_bounds = array<i64: 32, 32>}, {pipeline_mode = #tpu.pipeline_mode<synchronous>, transform_indices = @transform_3, window_bounds = array<i64: 1, 32>}, {pipeline_mode = #tpu.pipeline_mode<synchronous>, transform_indices = @transform_4, window_bounds = array<i64: 1, 32>}, {pipeline_mode = #tpu.pipeline_mode<synchronous>, transform_indices = @transform_5, window_bounds = array<i64: 1, 32>}, {transform_indices = @transform_6, window_bounds = array<i64: 32, 64>}, {transform_indices = @transform_7, window_bounds = array<i64: 1, 64>}, {transform_indices = @transform_8, window_bounds = array<i64: 64, 32>}, {pipeline_mode = #tpu.pipeline_mode<synchronous>, transform_indices = @transform_9, window_bounds = array<i64: 1, 32>}, {transform_indices = @transform_10, window_bounds = array<i64: 16, 32>}]} {
    %c0_i32 = arith.constant 0 : i32
    %0 = arith.cmpi eq, %arg1, %c0_i32 : i32
    %1 = arith.extui %0 : i1 to i32
    %c0_i32_0 = arith.constant 0 : i32
    %2 = arith.cmpi ne, %1, %c0_i32_0 : i32
    scf.if %2 {
      %c0_14 = arith.constant 0 : index
      %c0_15 = arith.constant 0 : index
      %17 = vector.load %arg3[%c0_14, %c0_15] : memref<16x32xbf16, #tpu.memory_space<vmem>>, vector<16x32xbf16>
      %c0_16 = arith.constant 0 : index
      %c0_17 = arith.constant 0 : index
      %18 = vector.load %arg4[%c0_16, %c0_17] : memref<32x32xbf16, #tpu.memory_space<vmem>>, vector<32x32xbf16>
      %cst_18 = arith.constant dense<0.000000e+00> : vector<16x32xf32>
      %19 = tpu.matmul %17, %18, %cst_18 {dimension_numbers = #tpu.dot_dimension_numbers<[1], [0], [0], [1], [0, 0, 1, 1], [], []>} : vector<16x32xbf16>, vector<32x32xbf16>, vector<16x32xf32> -> vector<16x32xf32>
      %c0_19 = arith.constant 0 : index
      %c0_20 = arith.constant 0 : index
      %20 = vector.load %arg5[%c0_19, %c0_20] : memref<1x32xf32, #tpu.memory_space<vmem>>, vector<1x32xf32>
      %21 = vector.broadcast %20 : vector<1x32xf32> to vector<16x32xf32>
      %22 = arith.addf %19, %21 : vector<16x32xf32>
      %c0_21 = arith.constant 0 : index
      %c0_22 = arith.constant 0 : index
      %23 = vector.load %arg2[%c0_21, %c0_22] : memref<16x32xf32, #tpu.memory_space<vmem>>, vector<16x32xf32>
      %24 = arith.addf %23, %22 : vector<16x32xf32>
      %c0_23 = arith.constant 0 : index
      %c0_24 = arith.constant 0 : index
      %25 = vector.load %arg6[%c0_23, %c0_24] : memref<1x32xf32, #tpu.memory_space<vmem>>, vector<1x32xf32>
      %c0_25 = arith.constant 0 : index
      %c0_26 = arith.constant 0 : index
      %26 = vector.load %arg7[%c0_25, %c0_26] : memref<1x32xf32, #tpu.memory_space<vmem>>, vector<1x32xf32>
      %cst_27 = arith.constant dense<0.000000e+00> : vector<16xf32>
      %27 = vector.multi_reduction <add>, %24, %cst_27 [1] : vector<16x32xf32> to vector<16xf32>
      %28 = vector.shape_cast %27 : vector<16xf32> to vector<16x1xf32>
      %cst_28 = arith.constant 3.200000e+01 : f32
      %29 = vector.broadcast %cst_28 : f32 to vector<16x1xf32>
      %30 = arith.divf %28, %29 : vector<16x1xf32>
      %31 = vector.broadcast %30 : vector<16x1xf32> to vector<16x32xf32>
      %32 = arith.subf %24, %31 : vector<16x32xf32>
      %33 = arith.mulf %32, %32 : vector<16x32xf32>
      %cst_29 = arith.constant dense<0.000000e+00> : vector<16xf32>
      %34 = vector.multi_reduction <add>, %33, %cst_29 [1] : vector<16x32xf32> to vector<16xf32>
      %35 = vector.shape_cast %34 : vector<16xf32> to vector<16x1xf32>
      %cst_30 = arith.constant 3.200000e+01 : f32
      %36 = vector.broadcast %cst_30 : f32 to vector<16x1xf32>
      %37 = arith.divf %35, %36 : vector<16x1xf32>
      %38 = vector.broadcast %30 : vector<16x1xf32> to vector<16x32xf32>
      %39 = arith.subf %24, %38 : vector<16x32xf32>
      %cst_31 = arith.constant 9.99999974E-6 : f32
      %40 = vector.broadcast %cst_31 : f32 to vector<16x1xf32>
      %41 = arith.addf %37, %40 : vector<16x1xf32>
      %42 = math.rsqrt %41 : vector<16x1xf32>
      %43 = vector.broadcast %42 : vector<16x1xf32> to vector<16x32xf32>
      %44 = arith.mulf %39, %43 : vector<16x32xf32>
      %45 = vector.broadcast %25 : vector<1x32xf32> to vector<16x32xf32>
      %46 = arith.mulf %44, %45 : vector<16x32xf32>
      %47 = vector.broadcast %26 : vector<1x32xf32> to vector<16x32xf32>
      %48 = arith.addf %46, %47 : vector<16x32xf32>
      %49 = arith.truncf %48 : vector<16x32xf32> to vector<16x32xbf16>
      %c0_32 = arith.constant 0 : index
      %c0_33 = arith.constant 0 : index
      %50 = vector.load %arg13[%c0_32, %c0_33] : memref<16x32xbf16, #tpu.memory_space<vmem>>, vector<16x32xbf16>
      tpu.vector_store %arg13[%c0_32, %c0_33], %49 {strides = array<i32>} : memref<16x32xbf16, #tpu.memory_space<vmem>>, vector<16x32xbf16>,
      %c0_34 = arith.constant 0 : index
      %c0_35 = arith.constant 0 : index
      %51 = vector.load %arg11[%c0_34, %c0_35] : memref<1x32xf32, #tpu.memory_space<vmem>>, vector<1x32xf32>
      %52 = vector.broadcast %51 : vector<1x32xf32> to vector<16x32xf32>
      %53 = arith.addf %24, %52 : vector<16x32xf32>
      %c0_36 = arith.constant 0 : index
      %c0_37 = arith.constant 0 : index
      %54 = vector.load %arg12[%c0_36, %c0_37] : memref<16x32xf32, #tpu.memory_space<vmem>>, vector<16x32xf32>
      tpu.vector_store %arg12[%c0_36, %c0_37], %53 {strides = array<i32>} : memref<16x32xf32, #tpu.memory_space<vmem>>, vector<16x32xf32>,
    } else {
    }
    %c0 = arith.constant 0 : index
    %c0_1 = arith.constant 0 : index
    %3 = vector.load %arg13[%c0, %c0_1] : memref<16x32xbf16, #tpu.memory_space<vmem>>, vector<16x32xbf16>
    %c0_2 = arith.constant 0 : index
    %c0_3 = arith.constant 0 : index
    %4 = vector.load %arg8[%c0_2, %c0_3] : memref<32x64xbf16, #tpu.memory_space<vmem>>, vector<32x64xbf16>
    %cst = arith.constant dense<0.000000e+00> : vector<16x64xf32>
    %5 = tpu.matmul %3, %4, %cst {dimension_numbers = #tpu.dot_dimension_numbers<[1], [0], [0], [1], [0, 0, 1, 1], [], []>} : vector<16x32xbf16>, vector<32x64xbf16>, vector<16x64xf32> -> vector<16x64xf32>
    %c0_4 = arith.constant 0 : index
    %c0_5 = arith.constant 0 : index
    %6 = vector.load %arg9[%c0_4, %c0_5] : memref<1x64xf32, #tpu.memory_space<vmem>>, vector<1x64xf32>
    %7 = vector.broadcast %6 : vector<1x64xf32> to vector<16x64xf32>
    %8 = arith.addf %5, %7 : vector<16x64xf32>
    %cst_6 = arith.constant 0.000000e+00 : f32
    %9 = vector.broadcast %cst_6 : f32 to vector<16x64xf32>
    %10 = arith.maximumf %8, %9 : vector<16x64xf32>
    %c0_7 = arith.constant 0 : index
    %c0_8 = arith.constant 0 : index
    %11 = vector.load %arg12[%c0_7, %c0_8] : memref<16x32xf32, #tpu.memory_space<vmem>>, vector<16x32xf32>
    %12 = arith.truncf %10 : vector<16x64xf32> to vector<16x64xbf16>
    %c0_9 = arith.constant 0 : index
    %c0_10 = arith.constant 0 : index
    %13 = vector.load %arg10[%c0_9, %c0_10] : memref<64x32xbf16, #tpu.memory_space<vmem>>, vector<64x32xbf16>
    %cst_11 = arith.constant dense<0.000000e+00> : vector<16x32xf32>
    %14 = tpu.matmul %12, %13, %cst_11 {dimension_numbers = #tpu.dot_dimension_numbers<[1], [0], [0], [1], [0, 0, 1, 1], [], []>} : vector<16x64xbf16>, vector<64x32xbf16>, vector<16x32xf32> -> vector<16x32xf32>
    %15 = arith.addf %11, %14 : vector<16x32xf32>
    %c0_12 = arith.constant 0 : index
    %c0_13 = arith.constant 0 : index
    %16 = vector.load %arg12[%c0_12, %c0_13] : memref<16x32xf32, #tpu.memory_space<vmem>>, vector<16x32xf32>
    tpu.vector_store %arg12[%c0_12, %c0_13], %15 {strides = array<i32>} : memref<16x32xf32, #tpu.memory_space<vmem>>, vector<16x32xf32>,
    return
  }
  func.func @transform_0(%arg0: i32, %arg1: i32) -> (i32, i32) {
    %c0_i32 = arith.constant 0 : i32
    %c0_i32_0 = arith.constant 0 : i32
    return %arg0, %c0_i32 : i32, i32
  }
  func.func @transform_1(%arg0: i32, %arg1: i32) -> (i32, i32) {
    %c0_i32 = arith.constant 0 : i32
    %c0_i32_0 = arith.constant 0 : i32
    return %arg0, %c0_i32 : i32, i32
  }
  func.func @transform_2(%arg0: i32, %arg1: i32) -> (i32, i32) {
    %c0_i32 = arith.constant 0 : i32
    %c0_i32_0 = arith.constant 0 : i32
    %c0_i32_1 = arith.constant 0 : i32
    return %c0_i32, %c0_i32_0 : i32, i32
  }
  func.func @transform_3(%arg0: i32, %arg1: i32) -> (i32, i32) {
    %c0_i32 = arith.constant 0 : i32
    %c0_i32_0 = arith.constant 0 : i32
    %c0_i32_1 = arith.constant 0 : i32
    return %c0_i32, %c0_i32_0 : i32, i32
  }
  func.func @transform_4(%arg0: i32, %arg1: i32) -> (i32, i32) {
    %c0_i32 = arith.constant 0 : i32
    %c0_i32_0 = arith.constant 0 : i32
    %c0_i32_1 = arith.constant 0 : i32
    return %c0_i32, %c0_i32_0 : i32, i32
  }
  func.func @transform_5(%arg0: i32, %arg1: i32) -> (i32, i32) {
    %c0_i32 = arith.constant 0 : i32
    %c0_i32_0 = arith.constant 0 : i32
    %c0_i32_1 = arith.constant 0 : i32
    return %c0_i32, %c0_i32_0 : i32, i32
  }
  func.func @transform_6(%arg0: i32, %arg1: i32) -> (i32, i32) {
    %c0_i32 = arith.constant 0 : i32
    %c0_i32_0 = arith.constant 0 : i32
    return %c0_i32, %arg1 : i32, i32
  }
  func.func @transform_7(%arg0: i32, %arg1: i32) -> (i32, i32) {
    %c0_i32 = arith.constant 0 : i32
    %c0_i32_0 = arith.constant 0 : i32
    return %c0_i32, %arg1 : i32, i32
  }
  func.func @transform_8(%arg0: i32, %arg1: i32) -> (i32, i32) {
    %c0_i32 = arith.constant 0 : i32
    %c0_i32_0 = arith.constant 0 : i32
    return %arg1, %c0_i32 : i32, i32
  }
  func.func @transform_9(%arg0: i32, %arg1: i32) -> (i32, i32) {
    %c0_i32 = arith.constant 0 : i32
    %c0_i32_0 = arith.constant 0 : i32
    %c0_i32_1 = arith.constant 0 : i32
    return %c0_i32, %c0_i32_0 : i32, i32
  }
  func.func @transform_10(%arg0: i32, %arg1: i32) -> (i32, i32) {
    %c0_i32 = arith.constant 0 : i32
    %c0_i32_0 = arith.constant 0 : i32
    return %arg0, %c0_i32 : i32, i32
  }
}

module attributes {stable_mosaic.version = 11 : i64} {
  func.func @kernel(%arg0: i32, %arg1: i32, %arg2: memref<16x32xf32, #tpu.memory_space<vmem>>, %arg3: memref<16x32xbf16, #tpu.memory_space<vmem>>, %arg4: memref<32x32xbf16, #tpu.memory_space<vmem>>, %arg5: memref<1x32xf32, #tpu.memory_space<vmem>>, %arg6: memref<1x32xf32, #tpu.memory_space<vmem>>, %arg7: memref<1x32xf32, #tpu.memory_space<vmem>>, %arg8: memref<32x64xbf16, #tpu.memory_space<vmem>>, %arg9: memref<1x64xf32, #tpu.memory_space<vmem>>, %arg10: memref<64x32xbf16, #tpu.memory_space<vmem>>, %arg11: memref<1x32xf32, #tpu.memory_space<vmem>>, %arg12: memref<1x32xf32, #tpu.memory_space<vmem>>, %arg13: memref<1x32xf32, #tpu.memory_space<vmem>>, %arg14: memref<16x32xf32, #tpu.memory_space<vmem>>, %arg15: memref<16x32xbf16, #tpu.memory_space<vmem>>) attributes {dimension_semantics = [#tpu.dimension_semantics<parallel>, #tpu.dimension_semantics<arbitrary>], iteration_bounds = array<i64: 1, 1>, scalar_prefetch = 0 : i64, scratch_operands = 1 : i64, tpu.core_type = #tpu.core_type<tc>, window_params = [{transform_indices = @transform_0, window_bounds = array<i64: 16, 32>}, {transform_indices = @transform_1, window_bounds = array<i64: 16, 32>}, {pipeline_mode = #tpu.pipeline_mode<synchronous>, transform_indices = @transform_2, window_bounds = array<i64: 32, 32>}, {pipeline_mode = #tpu.pipeline_mode<synchronous>, transform_indices = @transform_3, window_bounds = array<i64: 1, 32>}, {pipeline_mode = #tpu.pipeline_mode<synchronous>, transform_indices = @transform_4, window_bounds = array<i64: 1, 32>}, {pipeline_mode = #tpu.pipeline_mode<synchronous>, transform_indices = @transform_5, window_bounds = array<i64: 1, 32>}, {transform_indices = @transform_6, window_bounds = array<i64: 32, 64>}, {transform_indices = @transform_7, window_bounds = array<i64: 1, 64>}, {transform_indices = @transform_8, window_bounds = array<i64: 64, 32>}, {pipeline_mode = #tpu.pipeline_mode<synchronous>, transform_indices = @transform_9, window_bounds = array<i64: 1, 32>}, {pipeline_mode = #tpu.pipeline_mode<synchronous>, transform_indices = @transform_10, window_bounds = array<i64: 1, 32>}, {pipeline_mode = #tpu.pipeline_mode<synchronous>, transform_indices = @transform_11, window_bounds = array<i64: 1, 32>}, {transform_indices = @transform_12, window_bounds = array<i64: 16, 32>}]} {
    %c0_i32 = arith.constant 0 : i32
    %0 = arith.cmpi eq, %arg1, %c0_i32 : i32
    %1 = arith.extui %0 : i1 to i32
    %c0_i32_0 = arith.constant 0 : i32
    %2 = arith.cmpi ne, %1, %c0_i32_0 : i32
    scf.if %2 {
      %c0_16 = arith.constant 0 : index
      %c0_17 = arith.constant 0 : index
      %20 = vector.load %arg3[%c0_16, %c0_17] : memref<16x32xbf16, #tpu.memory_space<vmem>>, vector<16x32xbf16>
      %c0_18 = arith.constant 0 : index
      %c0_19 = arith.constant 0 : index
      %21 = vector.load %arg4[%c0_18, %c0_19] : memref<32x32xbf16, #tpu.memory_space<vmem>>, vector<32x32xbf16>
      %cst_20 = arith.constant dense<0.000000e+00> : vector<16x32xf32>
      %22 = tpu.matmul %20, %21, %cst_20 {dimension_numbers = #tpu.dot_dimension_numbers<[1], [0], [0], [1], [0, 0, 1, 1], [], []>} : vector<16x32xbf16>, vector<32x32xbf16>, vector<16x32xf32> -> vector<16x32xf32>
      %c0_21 = arith.constant 0 : index
      %c0_22 = arith.constant 0 : index
      %23 = vector.load %arg5[%c0_21, %c0_22] : memref<1x32xf32, #tpu.memory_space<vmem>>, vector<1x32xf32>
      %24 = vector.broadcast %23 : vector<1x32xf32> to vector<16x32xf32>
      %25 = arith.addf %22, %24 : vector<16x32xf32>
      %c0_23 = arith.constant 0 : index
      %c0_24 = arith.constant 0 : index
      %26 = vector.load %arg2[%c0_23, %c0_24] : memref<16x32xf32, #tpu.memory_space<vmem>>, vector<16x32xf32>
      %27 = arith.addf %26, %25 : vector<16x32xf32>
      %c0_25 = arith.constant 0 : index
      %c0_26 = arith.constant 0 : index
      %28 = vector.load %arg6[%c0_25, %c0_26] : memref<1x32xf32, #tpu.memory_space<vmem>>, vector<1x32xf32>
      %c0_27 = arith.constant 0 : index
      %c0_28 = arith.constant 0 : index
      %29 = vector.load %arg7[%c0_27, %c0_28] : memref<1x32xf32, #tpu.memory_space<vmem>>, vector<1x32xf32>
      %cst_29 = arith.constant dense<0.000000e+00> : vector<16xf32>
      %30 = vector.multi_reduction <add>, %27, %cst_29 [1] : vector<16x32xf32> to vector<16xf32>
      %31 = vector.shape_cast %30 : vector<16xf32> to vector<16x1xf32>
      %cst_30 = arith.constant 3.200000e+01 : f32
      %32 = vector.broadcast %cst_30 : f32 to vector<16x1xf32>
      %33 = arith.divf %31, %32 : vector<16x1xf32>
      %34 = vector.broadcast %33 : vector<16x1xf32> to vector<16x32xf32>
      %35 = arith.subf %27, %34 : vector<16x32xf32>
      %36 = arith.mulf %35, %35 : vector<16x32xf32>
      %cst_31 = arith.constant dense<0.000000e+00> : vector<16xf32>
      %37 = vector.multi_reduction <add>, %36, %cst_31 [1] : vector<16x32xf32> to vector<16xf32>
      %38 = vector.shape_cast %37 : vector<16xf32> to vector<16x1xf32>
      %cst_32 = arith.constant 3.200000e+01 : f32
      %39 = vector.broadcast %cst_32 : f32 to vector<16x1xf32>
      %40 = arith.divf %38, %39 : vector<16x1xf32>
      %41 = vector.broadcast %33 : vector<16x1xf32> to vector<16x32xf32>
      %42 = arith.subf %27, %41 : vector<16x32xf32>
      %cst_33 = arith.constant 9.99999974E-6 : f32
      %43 = vector.broadcast %cst_33 : f32 to vector<16x1xf32>
      %44 = arith.addf %40, %43 : vector<16x1xf32>
      %45 = math.rsqrt %44 : vector<16x1xf32>
      %46 = vector.broadcast %45 : vector<16x1xf32> to vector<16x32xf32>
      %47 = arith.mulf %42, %46 : vector<16x32xf32>
      %48 = vector.broadcast %28 : vector<1x32xf32> to vector<16x32xf32>
      %49 = arith.mulf %47, %48 : vector<16x32xf32>
      %50 = vector.broadcast %29 : vector<1x32xf32> to vector<16x32xf32>
      %51 = arith.addf %49, %50 : vector<16x32xf32>
      %52 = arith.truncf %51 : vector<16x32xf32> to vector<16x32xbf16>
      %c0_34 = arith.constant 0 : index
      %c0_35 = arith.constant 0 : index
      %53 = vector.load %arg15[%c0_34, %c0_35] : memref<16x32xbf16, #tpu.memory_space<vmem>>, vector<16x32xbf16>
      tpu.vector_store %arg15[%c0_34, %c0_35], %52 {strides = array<i32>} : memref<16x32xbf16, #tpu.memory_space<vmem>>, vector<16x32xbf16>,
      %c0_36 = arith.constant 0 : index
      %c0_37 = arith.constant 0 : index
      %54 = vector.load %arg11[%c0_36, %c0_37] : memref<1x32xf32, #tpu.memory_space<vmem>>, vector<1x32xf32>
      %55 = vector.broadcast %54 : vector<1x32xf32> to vector<16x32xf32>
      %56 = arith.addf %27, %55 : vector<16x32xf32>
      %c0_38 = arith.constant 0 : index
      %c0_39 = arith.constant 0 : index
      %57 = vector.load %arg14[%c0_38, %c0_39] : memref<16x32xf32, #tpu.memory_space<vmem>>, vector<16x32xf32>
      tpu.vector_store %arg14[%c0_38, %c0_39], %56 {strides = array<i32>} : memref<16x32xf32, #tpu.memory_space<vmem>>, vector<16x32xf32>,
    } else {
    }
    %c0 = arith.constant 0 : index
    %c0_1 = arith.constant 0 : index
    %3 = vector.load %arg15[%c0, %c0_1] : memref<16x32xbf16, #tpu.memory_space<vmem>>, vector<16x32xbf16>
    %c0_2 = arith.constant 0 : index
    %c0_3 = arith.constant 0 : index
    %4 = vector.load %arg8[%c0_2, %c0_3] : memref<32x64xbf16, #tpu.memory_space<vmem>>, vector<32x64xbf16>
    %cst = arith.constant dense<0.000000e+00> : vector<16x64xf32>
    %5 = tpu.matmul %3, %4, %cst {dimension_numbers = #tpu.dot_dimension_numbers<[1], [0], [0], [1], [0, 0, 1, 1], [], []>} : vector<16x32xbf16>, vector<32x64xbf16>, vector<16x64xf32> -> vector<16x64xf32>
    %c0_4 = arith.constant 0 : index
    %c0_5 = arith.constant 0 : index
    %6 = vector.load %arg9[%c0_4, %c0_5] : memref<1x64xf32, #tpu.memory_space<vmem>>, vector<1x64xf32>
    %7 = vector.broadcast %6 : vector<1x64xf32> to vector<16x64xf32>
    %8 = arith.addf %5, %7 : vector<16x64xf32>
    %cst_6 = arith.constant 0.000000e+00 : f32
    %9 = vector.broadcast %cst_6 : f32 to vector<16x64xf32>
    %10 = arith.maximumf %8, %9 : vector<16x64xf32>
    %c0_7 = arith.constant 0 : index
    %c0_8 = arith.constant 0 : index
    %11 = vector.load %arg14[%c0_7, %c0_8] : memref<16x32xf32, #tpu.memory_space<vmem>>, vector<16x32xf32>
    %12 = arith.truncf %10 : vector<16x64xf32> to vector<16x64xbf16>
    %c0_9 = arith.constant 0 : index
    %c0_10 = arith.constant 0 : index
    %13 = vector.load %arg10[%c0_9, %c0_10] : memref<64x32xbf16, #tpu.memory_space<vmem>>, vector<64x32xbf16>
    %cst_11 = arith.constant dense<0.000000e+00> : vector<16x32xf32>
    %14 = tpu.matmul %12, %13, %cst_11 {dimension_numbers = #tpu.dot_dimension_numbers<[1], [0], [0], [1], [0, 0, 1, 1], [], []>} : vector<16x64xbf16>, vector<64x32xbf16>, vector<16x32xf32> -> vector<16x32xf32>
    %15 = arith.addf %11, %14 : vector<16x32xf32>
    %c0_12 = arith.constant 0 : index
    %c0_13 = arith.constant 0 : index
    %16 = vector.load %arg14[%c0_12, %c0_13] : memref<16x32xf32, #tpu.memory_space<vmem>>, vector<16x32xf32>
    tpu.vector_store %arg14[%c0_12, %c0_13], %15 {strides = array<i32>} : memref<16x32xf32, #tpu.memory_space<vmem>>, vector<16x32xf32>,
    %c0_i32_14 = arith.constant 0 : i32
    %17 = arith.cmpi eq, %arg1, %c0_i32_14 : i32
    %18 = arith.extui %17 : i1 to i32
    %c0_i32_15 = arith.constant 0 : i32
    %19 = arith.cmpi ne, %18, %c0_i32_15 : i32
    scf.if %19 {
      %c0_16 = arith.constant 0 : index
      %c0_17 = arith.constant 0 : index
      %20 = vector.load %arg14[%c0_16, %c0_17] : memref<16x32xf32, #tpu.memory_space<vmem>>, vector<16x32xf32>
      %c0_18 = arith.constant 0 : index
      %c0_19 = arith.constant 0 : index
      %21 = vector.load %arg12[%c0_18, %c0_19] : memref<1x32xf32, #tpu.memory_space<vmem>>, vector<1x32xf32>
      %c0_20 = arith.constant 0 : index
      %c0_21 = arith.constant 0 : index
      %22 = vector.load %arg13[%c0_20, %c0_21] : memref<1x32xf32, #tpu.memory_space<vmem>>, vector<1x32xf32>
      %cst_22 = arith.constant dense<0.000000e+00> : vector<16xf32>
      %23 = vector.multi_reduction <add>, %20, %cst_22 [1] : vector<16x32xf32> to vector<16xf32>
      %24 = vector.shape_cast %23 : vector<16xf32> to vector<16x1xf32>
      %cst_23 = arith.constant 3.200000e+01 : f32
      %25 = vector.broadcast %cst_23 : f32 to vector<16x1xf32>
      %26 = arith.divf %24, %25 : vector<16x1xf32>
      %27 = vector.broadcast %26 : vector<16x1xf32> to vector<16x32xf32>
      %28 = arith.subf %20, %27 : vector<16x32xf32>
      %29 = arith.mulf %28, %28 : vector<16x32xf32>
      %cst_24 = arith.constant dense<0.000000e+00> : vector<16xf32>
      %30 = vector.multi_reduction <add>, %29, %cst_24 [1] : vector<16x32xf32> to vector<16xf32>
      %31 = vector.shape_cast %30 : vector<16xf32> to vector<16x1xf32>
      %cst_25 = arith.constant 3.200000e+01 : f32
      %32 = vector.broadcast %cst_25 : f32 to vector<16x1xf32>
      %33 = arith.divf %31, %32 : vector<16x1xf32>
      %34 = vector.broadcast %26 : vector<16x1xf32> to vector<16x32xf32>
      %35 = arith.subf %20, %34 : vector<16x32xf32>
      %cst_26 = arith.constant 9.99999974E-6 : f32
      %36 = vector.broadcast %cst_26 : f32 to vector<16x1xf32>
      %37 = arith.addf %33, %36 : vector<16x1xf32>
      %38 = math.rsqrt %37 : vector<16x1xf32>
      %39 = vector.broadcast %38 : vector<16x1xf32> to vector<16x32xf32>
      %40 = arith.mulf %35, %39 : vector<16x32xf32>
      %41 = vector.broadcast %21 : vector<1x32xf32> to vector<16x32xf32>
      %42 = arith.mulf %40, %41 : vector<16x32xf32>
      %43 = vector.broadcast %22 : vector<1x32xf32> to vector<16x32xf32>
      %44 = arith.addf %42, %43 : vector<16x32xf32>
      %c0_27 = arith.constant 0 : index
      %c0_28 = arith.constant 0 : index
      %45 = vector.load %arg14[%c0_27, %c0_28] : memref<16x32xf32, #tpu.memory_space<vmem>>, vector<16x32xf32>
      tpu.vector_store %arg14[%c0_27, %c0_28], %44 {strides = array<i32>} : memref<16x32xf32, #tpu.memory_space<vmem>>, vector<16x32xf32>,
    } else {
    }
    return
  }
  func.func @transform_0(%arg0: i32, %arg1: i32) -> (i32, i32) {
    %c0_i32 = arith.constant 0 : i32
    %c0_i32_0 = arith.constant 0 : i32
    return %arg0, %c0_i32 : i32, i32
  }
  func.func @transform_1(%arg0: i32, %arg1: i32) -> (i32, i32) {
    %c0_i32 = arith.constant 0 : i32
    %c0_i32_0 = arith.constant 0 : i32
    return %arg0, %c0_i32 : i32, i32
  }
  func.func @transform_2(%arg0: i32, %arg1: i32) -> (i32, i32) {
    %c0_i32 = arith.constant 0 : i32
    %c0_i32_0 = arith.constant 0 : i32
    %c0_i32_1 = arith.constant 0 : i32
    return %c0_i32, %c0_i32_0 : i32, i32
  }
  func.func @transform_3(%arg0: i32, %arg1: i32) -> (i32, i32) {
    %c0_i32 = arith.constant 0 : i32
    %c0_i32_0 = arith.constant 0 : i32
    %c0_i32_1 = arith.constant 0 : i32
    return %c0_i32, %c0_i32_0 : i32, i32
  }
  func.func @transform_4(%arg0: i32, %arg1: i32) -> (i32, i32) {
    %c0_i32 = arith.constant 0 : i32
    %c0_i32_0 = arith.constant 0 : i32
    %c0_i32_1 = arith.constant 0 : i32
    return %c0_i32, %c0_i32_0 : i32, i32
  }
  func.func @transform_5(%arg0: i32, %arg1: i32) -> (i32, i32) {
    %c0_i32 = arith.constant 0 : i32
    %c0_i32_0 = arith.constant 0 : i32
    %c0_i32_1 = arith.constant 0 : i32
    return %c0_i32, %c0_i32_0 : i32, i32
  }
  func.func @transform_6(%arg0: i32, %arg1: i32) -> (i32, i32) {
    %c0_i32 = arith.constant 0 : i32
    %c0_i32_0 = arith.constant 0 : i32
    return %c0_i32, %arg1 : i32, i32
  }
  func.func @transform_7(%arg0: i32, %arg1: i32) -> (i32, i32) {
    %c0_i32 = arith.constant 0 : i32
    %c0_i32_0 = arith.constant 0 : i32
    return %c0_i32, %arg1 : i32, i32
  }
  func.func @transform_8(%arg0: i32, %arg1: i32) -> (i32, i32) {
    %c0_i32 = arith.constant 0 : i32
    %c0_i32_0 = arith.constant 0 : i32
    return %arg1, %c0_i32 : i32, i32
  }
  func.func @transform_9(%arg0: i32, %arg1: i32) -> (i32, i32) {
    %c0_i32 = arith.constant 0 : i32
    %c0_i32_0 = arith.constant 0 : i32
    %c0_i32_1 = arith.constant 0 : i32
    return %c0_i32, %c0_i32_0 : i32, i32
  }
  func.func @transform_10(%arg0: i32, %arg1: i32) -> (i32, i32) {
    %c0_i32 = arith.constant 0 : i32
    %c0_i32_0 = arith.constant 0 : i32
    %c0_i32_1 = arith.constant 0 : i32
    return %c0_i32, %c0_i32_0 : i32, i32
  }
  func.func @transform_11(%arg0: i32, %arg1: i32) -> (i32, i32) {
    %c0_i32 = arith.constant 0 : i32
    %c0_i32_0 = arith.constant 0 : i32
    %c0_i32_1 = arith.constant 0 : i32
    return %c0_i32, %c0_i32_0 : i32, i32
  }
  func.func @transform_12(%arg0: i32, %arg1: i32) -> (i32, i32) {
    %c0_i32 = arith.constant 0 : i32
    %c0_i32_0 = arith.constant 0 : i32
    return %arg0, %c0_i32 : i32, i32
  }
}

</mosaic_0001>

<llo_original>
// kernel: decoder_forward.7
$region0: #{decoder_forward.7}
  #allocation0 [shape = 'u32[]', space=smem, size = 0x4, offset = 0x4, fixed_abs, tag = 'smem constant byte address 0x4 - core index']
  #allocation1 [shape = 'u32[144,128]{1,0:T(1,128)}', space=vmem, size = 0x12000, scoped, tag = 'internal scratch']
  %s0 = inlined_call_operand.vmem [shape: bf16[8,8,8], index: 0, kind: input, shape index: {}]
  %s1 = inlined_call_operand.vmem [shape: bf16[8,8,8], index: 1, kind: input, shape index: {}]
  %s2 = inlined_call_operand.vmem [shape: bf16[8,8,8], index: 2, kind: input, shape index: {}]
  %s3 = inlined_call_operand.vmem [shape: f32[8,8], index: 3, kind: input, shape index: {}]
  %s4 = inlined_call_operand.vmem [shape: bf16[8,8,8], index: 4, kind: output, shape index: {}]
  %s5 = sld [smem:[#allocation0]]
  $region49: #{decoder_forward.7} parent=0
    _
  %s7 = ssub.s32 1, %s5
  %s8 = scalar_select 0, %s7, %s5
  loop: start=0, step=1, limit=10
  $region2: #{decoder_forward.7} parent=0 // loop_pre_header
    _
  $region3: #{decoder_forward.7} parent=0 // loop_header
    %s10 = sphi 0, %s14
    %p11 = scmp.ge.s32.totalorder %s10, 10
    %s20 = sphi 0, %s22
    %s23 = sphi 0, %s20
    %s24 = sphi 0, %s23
    %s40 = sphi 0, %s24
    %s46 = sphi 0, %s48
    %s49 = sphi 0, %s46
    %s50 = sphi 0, %s49
    %s66 = sphi 0, %s50
    %s72 = sphi 0, %s74
    %s75 = sphi 0, %s72
    %s76 = sphi 0, %s75
    %s92 = sphi 0, %s76
    %s96 = sphi 0, %s96
    %s98 = sphi 0, %s96
    %s99 = sphi 0, %s98
    %s113 = sphi 0, %s99
    %s119 = sphi 0, %s121
    %s122 = sphi 0, %s119
    %s123 = sphi 0, %s122
    %s139 = sphi 0, %s123
  $region4: #{decoder_forward.7} parent=0 // loop_header_branch
    %13 = sbr.rel (%p11) target = $region8
  $region5: #{decoder_forward.7} parent=0 // loop_body
    %s15 = ssub.s32 %s10, 1
    %s16 = ssub.s32 %s10, 2
    %s17 = sadd.s32 %s10, 1
    %s18 = ssub.s32 %s10, %s17
    %p19 = scmp.eq.s32.totalorder %s18, 0
    %s21 = sadd.s32 %s20, 1
    %s22 = scalar_select %p19, %s20, %s21
    %p25 = pneg %p19
    %p26 = scmp.eq.s32.totalorder %s10, 7
    %p27 = por %p25, %p26
    %p28 = scmp.ne.s32.totalorder %s20, %s23
    %p29 = scmp.eq.s32.totalorder %s10, 0
    %p30 = por %p28, %p29
    %p31 = scmp.ne.s32.totalorder %s20, %s23
    %p32 = scmp.eq.s32.totalorder %s15, 7
    %p33 = por %p31, %p32
    %p34 = scmp.ne.s32.totalorder %s23, %s24
    %p35 = scmp.eq.s32.totalorder %s15, 0
    %p36 = por %p34, %p35
    %p37 = scmp.ne.s32.totalorder %s23, %s24
    %p38 = scmp.eq.s32.totalorder %s16, 7
    %p39 = por %p37, %p38
    %p41 = scmp.ne.s32.totalorder %s24, %s40
    %p42 = scmp.eq.s32.totalorder %s16, 0
    %p43 = por %p41, %p42
    %s44 = ssub.s32 %s10, %s17
    %p45 = scmp.eq.s32.totalorder %s44, 0
    %s47 = sadd.s32 %s46, 1
    %s48 = scalar_select %p45, %s46, %s47
    %p51 = pneg %p45
    %p52 = scmp.eq.s32.totalorder %s10, 7
    %p53 = por %p51, %p52
    %p54 = scmp.ne.s32.totalorder %s46, %s49
    %p55 = scmp.eq.s32.totalorder %s10, 0
    %p56 = por %p54, %p55
    %p57 = scmp.ne.s32.totalorder %s46, %s49
    %p58 = scmp.eq.s32.totalorder %s15, 7
    %p59 = por %p57, %p58
    %p60 = scmp.ne.s32.totalorder %s49, %s50
    %p61 = scmp.eq.s32.totalorder %s15, 0
    %p62 = por %p60, %p61
    %p63 = scmp.ne.s32.totalorder %s49, %s50
    %p64 = scmp.eq.s32.totalorder %s16, 7
    %p65 = por %p63, %p64
    %p67 = scmp.ne.s32.totalorder %s50, %s66
    %p68 = scmp.eq.s32.totalorder %s16, 0
    %p69 = por %p67, %p68
    %s70 = ssub.s32 %s10, %s17
    %p71 = scmp.eq.s32.totalorder %s70, 0
    %s73 = sadd.s32 %s72, 1
    %s74 = scalar_select %p71, %s72, %s73
    %p77 = pneg %p71
    %p78 = scmp.eq.s32.totalorder %s10, 7
    %p79 = por %p77, %p78
    %p80 = scmp.ne.s32.totalorder %s72, %s75
    %p81 = scmp.eq.s32.totalorder %s10, 0
    %p82 = por %p80, %p81
    %p83 = scmp.ne.s32.totalorder %s72, %s75
    %p84 = scmp.eq.s32.totalorder %s15, 7
    %p85 = por %p83, %p84
    %p86 = scmp.ne.s32.totalorder %s75, %s76
    %p87 = scmp.eq.s32.totalorder %s15, 0
    %p88 = por %p86, %p87
    %p89 = scmp.ne.s32.totalorder %s75, %s76
    %p90 = scmp.eq.s32.totalorder %s16, 7
    %p91 = por %p89, %p90
    %p93 = scmp.ne.s32.totalorder %s76, %s92
    %p94 = scmp.eq.s32.totalorder %s16, 0
    %p95 = por %p93, %p94
    %s97 = sadd.s32 %s96, 1
    %p100 = scmp.eq.s32.totalorder %s10, 7
    %p101 = scmp.ne.s32.totalorder %s96, %s98
    %p102 = scmp.eq.s32.totalorder %s10, 0
    %p103 = por %p101, %p102
    %p104 = scmp.ne.s32.totalorder %s96, %s98
    %p105 = scmp.eq.s32.totalorder %s15, 7
    %p106 = por %p104, %p105
    %p107 = scmp.ne.s32.totalorder %s98, %s99
    %p108 = scmp.eq.s32.totalorder %s15, 0
    %p109 = por %p107, %p108
    %p110 = scmp.ne.s32.totalorder %s98, %s99
    %p111 = scmp.eq.s32.totalorder %s16, 7
    %p112 = por %p110, %p111
    %p114 = scmp.ne.s32.totalorder %s99, %s113
    %p115 = scmp.eq.s32.totalorder %s16, 0
    %p116 = por %p114, %p115
    %s117 = ssub.s32 %s10, %s17
    %p118 = scmp.eq.s32.totalorder %s117, 0
    %s120 = sadd.s32 %s119, 1
    %s121 = scalar_select %p118, %s119, %s120
    %p124 = pneg %p118
    %p125 = scmp.eq.s32.totalorder %s10, 7
    %p126 = por %p124, %p125
    %p127 = scmp.ne.s32.totalorder %s119, %s122
    %p128 = scmp.eq.s32.totalorder %s10, 0
    %p129 = por %p127, %p128
    %p130 = scmp.ne.s32.totalorder %s119, %s122
    %p131 = scmp.eq.s32.totalorder %s15, 7
    %p132 = por %p130, %p131
    %p133 = scmp.ne.s32.totalorder %s122, %s123
    %p134 = scmp.eq.s32.totalorder %s15, 0
    %p135 = por %p133, %p134
    %p136 = scmp.ne.s32.totalorder %s122, %s123
    %p137 = scmp.eq.s32.totalorder %s16, 7
    %p138 = por %p136, %p137
    %p140 = scmp.ne.s32.totalorder %s123, %s139
    %p141 = scmp.eq.s32.totalorder %s16, 0
    %p142 = por %p140, %p141
    %p143 = scmp.le.s32.totalorder 1, %s10
    %p144 = scmp.lt.s32.totalorder %s10, 9
    %p145 = pnand %p143, %p144
    %p146 = pneg %p145
    // Predicated region
    $region9: #{decoder_forward.7} parent=5 // pred_check
      _
    $region10: #{decoder_forward.7} parent=5 // pred_check_branch
      %148 = sbr.rel (%p145) target = $region12
    $region11: #{decoder_forward.7} parent=5 // pred_region
      %s149 = ssub.s32 %s10, 1
      // Predicated region
      $region13: #{decoder_forward.7} parent=11 // pred_check
        %p150 = pneg %p109
      $region14: #{decoder_forward.7} parent=11 // pred_check_branch
        %152 = sbr.rel (%p150) target = $region16
      $region15: #{decoder_forward.7} parent=11 // pred_region
        _
      $region16: #{decoder_forward.7} parent=11 // pred_fallthru
        _
    $region12: #{decoder_forward.7} parent=5 // pred_fallthru
      _
    %p153 = scmp.lt.s32.totalorder %s10, 8
    // Predicated region
    $region17: #{decoder_forward.7} parent=5 // pred_check
      %p154 = pneg %p153
    $region18: #{decoder_forward.7} parent=5 // pred_check_branch
      %156 = sbr.rel (%p154) target = $region20
    $region19: #{decoder_forward.7} parent=5 // pred_region
      // Predicated region
      $region21: #{decoder_forward.7} parent=19 // pred_check
        %p157 = pneg %p30
      $region22: #{decoder_forward.7} parent=19 // pred_check_branch
        %159 = sbr.rel (%p157) target = $region24
      $region23: #{decoder_forward.7} parent=19 // pred_region
        %p160 = scmp.lt.s32.totalorder %s10, 7
        %s161 = scalar_select %p160, %s10, 7
        %s162 = smul.addr %s161, 4
        %s163 = scalar_lea.vmem %s0, %s162
      $region24: #{decoder_forward.7} parent=19 // pred_fallthru
        _
      // Predicated region
      $region25: #{decoder_forward.7} parent=19 // pred_check
        %p164 = pneg %p56
      $region26: #{decoder_forward.7} parent=19 // pred_check_branch
        %166 = sbr.rel (%p164) target = $region28
      $region27: #{decoder_forward.7} parent=19 // pred_region
        %p167 = scmp.lt.s32.totalorder %s10, 7
        %s168 = scalar_select %p167, %s10, 7
        %s169 = smul.addr %s168, 4
        %s170 = scalar_lea.vmem %s1, %s169
      $region28: #{decoder_forward.7} parent=19 // pred_fallthru
        _
      // Predicated region
      $region29: #{decoder_forward.7} parent=19 // pred_check
        %p171 = pneg %p82
      $region30: #{decoder_forward.7} parent=19 // pred_check_branch
        %173 = sbr.rel (%p171) target = $region32
      $region31: #{decoder_forward.7} parent=19 // pred_region
        %p174 = scmp.lt.s32.totalorder %s10, 7
        %s175 = scalar_select %p174, %s10, 7
        %s176 = smul.addr %s175, 4
        %s177 = scalar_lea.vmem %s2, %s176
      $region32: #{decoder_forward.7} parent=19 // pred_fallthru
        _
    $region20: #{decoder_forward.7} parent=5 // pred_fallthru
      _
    %p178 = scmp.le.s32.totalorder 1, %s10
    %p179 = scmp.lt.s32.totalorder %s10, 9
    %p180 = pnand %p178, %p179
    %p181 = pneg %p180
    // Predicated region
    $region33: #{decoder_forward.7} parent=5 // pred_check
      _
    $region34: #{decoder_forward.7} parent=5 // pred_check_branch
      %183 = sbr.rel (%p180) target = $region36
    $region35: #{decoder_forward.7} parent=5 // pred_region
      %s184 = ssub.s32 %s10, 1
      %p185 = scmp.lt.s32.totalorder %s15, 7
      %s186 = scalar_select %p185, %s15, 7
      %s187 = smul.addr %s186, 4
      %s188 = scalar_lea.vmem %s0, %s187
      %p189 = pneg %p36
      %p190 = pneg %p33
      %p191 = scmp.lt.s32.totalorder %s15, 7
      %s192 = scalar_select %p191, %s15, 7
      %s193 = smul.addr %s192, 4
      %s194 = scalar_lea.vmem %s1, %s193
      %p195 = pneg %p62
      %p196 = pneg %p59
      %p197 = scmp.lt.s32.totalorder %s15, 7
      %s198 = scalar_select %p197, %s15, 7
      %s199 = smul.addr %s198, 4
      %s200 = scalar_lea.vmem %s2, %s199
      %p201 = pneg %p88
      %p202 = pneg %p85
      %p203 = pneg %p109
      %p204 = pneg %p106
      %p205 = pneg %p135
      %p206 = pneg %p132
      %p207 = scmp.lt.s32.totalorder %s15, 7
      %s208 = scalar_select %p207, %s15, 7
      %s209 = smul.addr %s208, 4
      %s210 = scalar_lea.vmem %s4, %s209
      %p211 = scmp.lt.s32.totalorder %s15, 7
      %s212 = scalar_select %p211, %s15, 7
      %s213 = smul.addr %s212, 4
      %s214 = scalar_lea.vmem %s0, %s213
      %p215 = scmp.lt.s32.totalorder %s15, 7
      %s216 = scalar_select %p215, %s15, 7
      %s217 = smul.addr %s216, 4
      %s218 = scalar_lea.vmem %s1, %s217
      %p219 = scmp.lt.s32.totalorder %s15, 7
      %s220 = scalar_select %p219, %s15, 7
      %s221 = smul.addr %s220, 4
      %s222 = scalar_lea.vmem %s2, %s221
      %p223 = scmp.lt.s32.totalorder %s15, 7
      %s224 = scalar_select %p223, %s15, 7
      %s225 = smul.addr %s224, 4
      %s226 = scalar_lea.vmem %s4, %s225
      %v228 = vld [vmem:[%s214] sm:$0xf]
      %v229 = vld [vmem:[%s218] sm:$0xf]
      %v230 = vld [vmem:[%s222] sm:$0xf]
      %v231 = vld [vmem:[%s3] sm:$0xff]
      %vm232 = vcmask 64512
      %v234 = vsel %vm232, %v228, 0
      %v237 = vsel %vm232, %v229, 0
      %239 = vmatprep.subr.bf16.mxu0 0
      %240 = vmatpush1.bf16.xpose.msra.mxu0 %v237
      %241 = vmatprep.subr.bf16.mxu0 0
      %242 = vmatpush1.bf16.xpose.msra.mxu0 0
      %243 = vmatprep.subr.bf16.mxu0 0
      %244 = vmatpush1.bf16.xpose.msra.mxu0 0
      %245 = vmatprep.subr.bf16.mxu0 0
      %246 = vmatpush1.bf16.xpose.msra.mxu0 0
      %247 = vmatprep.subr.bf16.mxu0 0
      %248 = vmatpush1.bf16.xpose.msra.mxu0 0
      %249 = vmatprep.subr.bf16.mxu0 0
      %250 = vmatpush1.bf16.xpose.msra.mxu0 0
      %251 = vmatprep.subr.bf16.mxu0 0
      %252 = vmatpush1.bf16.xpose.msra.mxu0 0
      %253 = vmatprep.subr.bf16.mxu0 0
      %254 = vmatpush1.bf16.xpose.msra.mxu0 0
      %255 = vmatprep.subr.bf16.mxu0 0
      %256 = vmatpush1.bf16.xpose.msra.mxu0 0
      %257 = vmatprep.subr.bf16.mxu0 0
      %258 = vmatpush1.bf16.xpose.msra.mxu0 0
      %259 = vmatprep.subr.bf16.mxu0 0
      %260 = vmatpush1.bf16.xpose.msra.mxu0 0
      %261 = vmatprep.subr.bf16.mxu0 0
      %262 = vmatpush1.bf16.xpose.msra.mxu0 0
      %263 = vmatprep.subr.bf16.mxu0 0
      %264 = vmatpush1.bf16.xpose.msra.mxu0 0
      %265 = vmatprep.subr.bf16.mxu0 0
      %266 = vmatpush1.bf16.xpose.msra.mxu0 0
      %267 = vmatprep.subr.bf16.mxu0 0
      %268 = vmatpush1.bf16.xpose.msra.mxu0 0
      %269 = vmatprep.subr.bf16.mxu0 0
      %270 = vmatpush1.bf16.xpose.msra.mxu0 0
      %271 = vmatprep.mubr.bf16.mxu0 0
      %272 = vmatmul.mubr.bf16.gmra.mrb[0].mxu0 %v234
      %v273 = vpop.f32.mrb[0].mxu0
      %v274 = vadd.f32 %v231, %v273
      %v275 = vpop.f32.mrb[0].mxu0
      %v276 = vpop.f32.mrb[0].mxu0
      %v277 = vpop.f32.mrb[0].mxu0
      %278 = vdwg.mxu0
      %v279 = vsel %vm232, %v274, -inf
      %280 = vmax.xlane.f32.xlu0 %v279
      %v281 = vpop.xlane.xlu0 %280
      %v282 = vsub.f32 %v274, %v281
      %v283 = vmul.f32 %v282, 1.442695
      %v284 = vpow.pop %v283
      %v285 = vsel %vm232, %v284, 0.0
      %286 = vadd.xlane.f32.xlu0 %v285
      %v287 = vpop.xlane.xlu0 %286
      %v288 = vpack.c.bf16 %v284, %v284
      %v290 = vsel %vm232, %v288, 0
      %vm292 = vcmask 1043456
      %v294 = vsel %vm292, %v230, 0
      %296 = vmatprep.subr.bf16.mxu0 0
      %297 = vmatpush1.bf16.msra.mxu0 %v294
      %298 = vmatprep.subr.bf16.mxu0 0
      %299 = vmatpush1.bf16.msra.mxu0 0
      %300 = vmatprep.subr.bf16.mxu0 0
      %301 = vmatpush1.bf16.msra.mxu0 0
      %302 = vmatprep.subr.bf16.mxu0 0
      %303 = vmatpush1.bf16.msra.mxu0 0
      %304 = vmatprep.subr.bf16.mxu0 0
      %305 = vmatpush1.bf16.msra.mxu0 0
      %306 = vmatprep.subr.bf16.mxu0 0
      %307 = vmatpush1.bf16.msra.mxu0 0
      %308 = vmatprep.subr.bf16.mxu0 0
      %309 = vmatpush1.bf16.msra.mxu0 0
      %310 = vmatprep.subr.bf16.mxu0 0
      %311 = vmatpush1.bf16.msra.mxu0 0
      %312 = vmatprep.subr.bf16.mxu0 0
      %313 = vmatpush1.bf16.msra.mxu0 0
      %314 = vmatprep.subr.bf16.mxu0 0
      %315 = vmatpush1.bf16.msra.mxu0 0
      %316 = vmatprep.subr.bf16.mxu0 0
      %317 = vmatpush1.bf16.msra.mxu0 0
      %318 = vmatprep.subr.bf16.mxu0 0
      %319 = vmatpush1.bf16.msra.mxu0 0
      %320 = vmatprep.subr.bf16.mxu0 0
      %321 = vmatpush1.bf16.msra.mxu0 0
      %322 = vmatprep.subr.bf16.mxu0 0
      %323 = vmatpush1.bf16.msra.mxu0 0
      %324 = vmatprep.subr.bf16.mxu0 0
      %325 = vmatpush1.bf16.msra.mxu0 0
      %326 = vmatprep.subr.bf16.mxu0 0
      %327 = vmatpush1.bf16.msra.mxu0 0
      %328 = vmatprep.mubr.bf16.mxu0 0
      %329 = vmatmul.mubr.bf16.gmra.mrb[0].mxu0 %v290
      %v330 = vpop.f32.mrb[0].mxu0
      %v331 = vadd.f32 0.0, %v330
      %v332 = vpop.f32.mrb[0].mxu0
      %v333 = vpop.f32.mrb[0].mxu0
      %v334 = vpop.f32.mrb[0].mxu0
      %335 = vdwg.mxu0
      %v336 = vrcp.pop %v287
      %v337 = vmul.f32 %v331, %v336
      %v338 = vpack.c.bf16 %v337, %v337
      %vm339 = vcmask 60416
      %340 = vst.msk [vmem:[%s226] sm:$0xf] %vm339, %v338
      %p341 = scmp.lt.s32.totalorder %s15, 7
      %s342 = scalar_select %p341, %s15, 7
      %s343 = smul.addr %s342, 4
      %s344 = scalar_lea.vmem %s4, %s343
      // Predicated region
      $region37: #{decoder_forward.7} parent=35 // pred_check
        %p345 = pneg %p132
      $region38: #{decoder_forward.7} parent=35 // pred_check_branch
        %347 = sbr.rel (%p345) target = $region40
      $region39: #{decoder_forward.7} parent=35 // pred_region
        _
      $region40: #{decoder_forward.7} parent=35 // pred_fallthru
        _
    $region36: #{decoder_forward.7} parent=5 // pred_fallthru
      _
    %p348 = scmp.le.s32.totalorder 2, %s10
    // Predicated region
    $region41: #{decoder_forward.7} parent=5 // pred_check
      %p349 = pneg %p348
    $region42: #{decoder_forward.7} parent=5 // pred_check_branch
      %351 = sbr.rel (%p349) target = $region44
    $region43: #{decoder_forward.7} parent=5 // pred_region
      %s352 = ssub.s32 %s10, 2
      // Predicated region
      $region45: #{decoder_forward.7} parent=43 // pred_check
        %p353 = pneg %p138
      $region46: #{decoder_forward.7} parent=43 // pred_check_branch
        %355 = sbr.rel (%p353) target = $region48
      $region47: #{decoder_forward.7} parent=43 // pred_region
        %p356 = scmp.lt.s32.totalorder %s16, 7
        %s357 = scalar_select %p356, %s16, 7
        %s358 = smul.addr %s357, 4
        %s359 = scalar_lea.vmem %s4, %s358
      $region48: #{decoder_forward.7} parent=43 // pred_fallthru
        _
    $region44: #{decoder_forward.7} parent=5 // pred_fallthru
      _
  $region6: #{decoder_forward.7} parent=0 // loop_footer
    %s14 = sadd.s32 1, %s10
  $region7: #{decoder_forward.7} parent=0 // loop_footer_branch
    %9 = sbr.rel target = $region3
  $region8: #{decoder_forward.7} parent=0 // loop_exit
    _

// kernel: decoder_forward.6
$region0: #{decoder_forward.6}
  #allocation0 [shape = 'u32[]', space=smem, size = 0x4, offset = 0x4, fixed_abs, tag = 'smem constant byte address 0x4 - core index']
  #allocation1 [shape = 'u32[144,128]{1,0:T(1,128)}', space=vmem, size = 0x12000, scoped, tag = 'internal scratch']
  %s0 = inlined_call_operand.vmem [shape: f32[16,32], index: 0, kind: input, shape index: {}]
  %s1 = inlined_call_operand.vmem [shape: f32[1,32], index: 1, kind: input, shape index: {}]
  %s2 = inlined_call_operand.vmem [shape: f32[1,32], index: 2, kind: input, shape index: {}]
  %s3 = inlined_call_operand.vmem [shape: bf16[32,32], index: 3, kind: input, shape index: {}]
  %s4 = inlined_call_operand.vmem [shape: f32[1,32], index: 4, kind: input, shape index: {}]
  %s5 = inlined_call_operand.vmem [shape: bf16[32,32], index: 5, kind: input, shape index: {}]
  %s6 = inlined_call_operand.vmem [shape: f32[1,32], index: 6, kind: input, shape index: {}]
  %s7 = inlined_call_operand.vmem [shape: bf16[32,32], index: 7, kind: input, shape index: {}]
  %s8 = inlined_call_operand.vmem [shape: f32[1,32], index: 8, kind: input, shape index: {}]
  %s9 = inlined_call_operand.vmem [shape: bf16[16,32], index: 9, kind: output, shape index: {0}]
  %s10 = inlined_call_operand.vmem [shape: bf16[16,32], index: 10, kind: output, shape index: {1}]
  %s11 = inlined_call_operand.vmem [shape: bf16[16,32], index: 11, kind: output, shape index: {2}]
  %12 = xla_tuple %s9, %s10, %s11
  %s13 = sld [smem:[#allocation0]]
  $region62: #{decoder_forward.6} parent=0
    _
  %s15 = ssub.s32 1, %s13
  %s16 = scalar_select 0, %s15, %s13
  // Predicated region
  $region2: #{decoder_forward.6} parent=0 // pred_check
    _
  $region3: #{decoder_forward.6} parent=0 // pred_check_branch
    %18 = sbr.rel (0) target = $region5
  $region4: #{decoder_forward.6} parent=0 // pred_region
    _
  $region5: #{decoder_forward.6} parent=0 // pred_fallthru
    _
  // Predicated region
  $region6: #{decoder_forward.6} parent=0 // pred_check
    _
  $region7: #{decoder_forward.6} parent=0 // pred_check_branch
    %20 = sbr.rel (0) target = $region9
  $region8: #{decoder_forward.6} parent=0 // pred_region
    _
  $region9: #{decoder_forward.6} parent=0 // pred_fallthru
    _
  // Predicated region
  $region10: #{decoder_forward.6} parent=0 // pred_check
    _
  $region11: #{decoder_forward.6} parent=0 // pred_check_branch
    %22 = sbr.rel (0) target = $region13
  $region12: #{decoder_forward.6} parent=0 // pred_region
    _
  $region13: #{decoder_forward.6} parent=0 // pred_fallthru
    _
  // Predicated region
  $region14: #{decoder_forward.6} parent=0 // pred_check
    _
  $region15: #{decoder_forward.6} parent=0 // pred_check_branch
    %24 = sbr.rel (0) target = $region17
  $region16: #{decoder_forward.6} parent=0 // pred_region
    _
  $region17: #{decoder_forward.6} parent=0 // pred_fallthru
    _
  // Predicated region
  $region18: #{decoder_forward.6} parent=0 // pred_check
    _
  $region19: #{decoder_forward.6} parent=0 // pred_check_branch
    %26 = sbr.rel (0) target = $region21
  $region20: #{decoder_forward.6} parent=0 // pred_region
    _
  $region21: #{decoder_forward.6} parent=0 // pred_fallthru
    _
  // Predicated region
  $region22: #{decoder_forward.6} parent=0 // pred_check
    _
  $region23: #{decoder_forward.6} parent=0 // pred_check_branch
    %28 = sbr.rel (0) target = $region25
  $region24: #{decoder_forward.6} parent=0 // pred_region
    _
  $region25: #{decoder_forward.6} parent=0 // pred_fallthru
    _
  // Predicated region
  $region26: #{decoder_forward.6} parent=0 // pred_check
    _
  $region27: #{decoder_forward.6} parent=0 // pred_check_branch
    %30 = sbr.rel (0) target = $region29
  $region28: #{decoder_forward.6} parent=0 // pred_region
    _
  $region29: #{decoder_forward.6} parent=0 // pred_fallthru
    _
  // Predicated region
  $region30: #{decoder_forward.6} parent=0 // pred_check
    _
  $region31: #{decoder_forward.6} parent=0 // pred_check_branch
    %32 = sbr.rel (0) target = $region33
  $region32: #{decoder_forward.6} parent=0 // pred_region
    _
  $region33: #{decoder_forward.6} parent=0 // pred_fallthru
    _
  // Predicated region
  $region34: #{decoder_forward.6} parent=0 // pred_check
    _
  $region35: #{decoder_forward.6} parent=0 // pred_check_branch
    %34 = sbr.rel (0) target = $region37
  $region36: #{decoder_forward.6} parent=0 // pred_region
    _
  $region37: #{decoder_forward.6} parent=0 // pred_fallthru
    _
  %v36 = vld [vmem:[%s0] sm:$0xff]
  %v37 = vld [vmem:[%s0 + $0x8] sm:$0xff]
  %v38 = vld [vmem:[%s1] sm:$0x1]
  %v39 = vld [vmem:[%s2] sm:$0x1]
  %vm40 = vcmask 261120
  %v41 = vsel %vm40, %v36, 0.0
  %42 = vadd.xlane.f32.xlu0 %v41
  %v43 = vpop.xlane.xlu0 %42
  %v44 = vsel %vm40, %v37, 0.0
  %45 = vadd.xlane.f32.xlu0 %v44
  %v46 = vpop.xlane.xlu0 %45
  %v47 = vrcp.pop 32.0
  %v48 = vmul.f32 %v43, %v47
  %v49 = vmul.f32 %v46, %v47
  %v50 = vsub.f32 %v36, %v48
  %v51 = vsub.f32 %v37, %v49
  %v52 = vmul.f32 %v50, %v50
  %v53 = vmul.f32 %v51, %v51
  %v54 = vsel %vm40, %v52, 0.0
  %55 = vadd.xlane.f32.xlu0 %v54
  %v56 = vpop.xlane.xlu0 %55
  %v57 = vsel %vm40, %v53, 0.0
  %58 = vadd.xlane.f32.xlu0 %v57
  %v59 = vpop.xlane.xlu0 %58
  %v60 = vmul.f32 %v56, %v47
  %v61 = vmul.f32 %v59, %v47
  %v62 = vadd.f32 %v60, 1e-05
  %v63 = vadd.f32 %v61, 1e-05
  %v64 = vrsqrt.pop %v62
  %v65 = vrsqrt.pop %v63
  %v66 = vmul.f32 %v50, %v64
  %v67 = vmul.f32 %v51, %v65
  %v69 = vlaneseq
  %v70 = vshrl.u32 %v69, 7
  %v71 = vsub.s32 0, %v70
  %v72 = vrot.slane %v38, %v71
  %v74 = vmul.f32 %v66, %v72
  %v75 = vmul.f32 %v67, %v72
  %v77 = vlaneseq
  %v78 = vshrl.u32 %v77, 7
  %v79 = vsub.s32 0, %v78
  %v80 = vrot.slane %v39, %v79
  %v82 = vadd.f32 %v74, %v80
  %v83 = vadd.f32 %v75, %v80
  %v84 = vpack.c.bf16 %v83, %v82
  %v85 = vld [vmem:[%s3] sm:$0xf]
  %v86 = vld [vmem:[%s3 + $0x4] sm:$0xf]
  %v87 = vld [vmem:[%s3 + $0x8] sm:$0xf]
  %v88 = vld [vmem:[%s3 + $0xc] sm:$0xf]
  %v89 = vld [vmem:[%s4] sm:$0x1]
  %v91 = vlaneseq
  %v92 = vshrl.u32 %v91, 7
  %v93 = vsub.s32 0, %v92
  %v94 = vrot.slane %v89, %v93
  %v100 = vunpack.c.l.b16 %v85
  %v101 = vunpack.c.l.b16 %v86
  %v102 = vunpack.c.l.b16 %v87
  %v103 = vunpack.c.l.b16 %v88
  %v104 = vpack.c.b16 %v101, %v100
  %v105 = vpack.c.b16 %v103, %v102
  %v109 = vsel %vm40, %v84, 0
  %111 = vmatprep.subr.bf16.mxu0 0
  %112 = vmatpush1.bf16.msra.mxu0 %v104
  %113 = vmatprep.subr.bf16.mxu0 0
  %114 = vmatpush1.bf16.msra.mxu0 %v105
  %115 = vmatprep.subr.bf16.mxu0 0
  %116 = vmatpush1.bf16.msra.mxu0 0
  %117 = vmatprep.subr.bf16.mxu0 0
  %118 = vmatpush1.bf16.msra.mxu0 0
  %119 = vmatprep.subr.bf16.mxu0 0
  %120 = vmatpush1.bf16.msra.mxu0 0
  %121 = vmatprep.subr.bf16.mxu0 0
  %122 = vmatpush1.bf16.msra.mxu0 0
  %123 = vmatprep.subr.bf16.mxu0 0
  %124 = vmatpush1.bf16.msra.mxu0 0
  %125 = vmatprep.subr.bf16.mxu0 0
  %126 = vmatpush1.bf16.msra.mxu0 0
  %127 = vmatprep.subr.bf16.mxu0 0
  %128 = vmatpush1.bf16.msra.mxu0 0
  %129 = vmatprep.subr.bf16.mxu0 0
  %130 = vmatpush1.bf16.msra.mxu0 0
  %131 = vmatprep.subr.bf16.mxu0 0
  %132 = vmatpush1.bf16.msra.mxu0 0
  %133 = vmatprep.subr.bf16.mxu0 0
  %134 = vmatpush1.bf16.msra.mxu0 0
  %135 = vmatprep.subr.bf16.mxu0 0
  %136 = vmatpush1.bf16.msra.mxu0 0
  %137 = vmatprep.subr.bf16.mxu0 0
  %138 = vmatpush1.bf16.msra.mxu0 0
  %139 = vmatprep.subr.bf16.mxu0 0
  %140 = vmatpush1.bf16.msra.mxu0 0
  %141 = vmatprep.subr.bf16.mxu0 0
  %142 = vmatpush1.bf16.msra.mxu0 0
  %143 = vmatprep.mubr.bf16.mxu0 0
  %144 = vmatmul.mubr.bf16.gmra.mrb[0].mxu0 %v109
  %v145 = vpop.f32.mrb[0].mxu0
  %v146 = vadd.f32 %v94, %v145
  %v147 = vpop.f32.mrb[0].mxu0
  %v148 = vpop.f32.mrb[0].mxu0
  %v149 = vadd.f32 %v94, %v148
  %v150 = vpop.f32.mrb[0].mxu0
  %151 = vdwg.mxu0
  %v152 = vld [vmem:[%s5] sm:$0xf]
  %v153 = vld [vmem:[%s5 + $0x4] sm:$0xf]
  %v154 = vld [vmem:[%s5 + $0x8] sm:$0xf]
  %v155 = vld [vmem:[%s5 + $0xc] sm:$0xf]
  %v156 = vld [vmem:[%s6] sm:$0x1]
  %v158 = vlaneseq
  %v159 = vshrl.u32 %v158, 7
  %v160 = vsub.s32 0, %v159
  %v161 = vrot.slane %v156, %v160
  %v167 = vunpack.c.l.b16 %v152
  %v168 = vunpack.c.l.b16 %v153
  %v169 = vunpack.c.l.b16 %v154
  %v170 = vunpack.c.l.b16 %v155
  %v171 = vpack.c.b16 %v168, %v167
  %v172 = vpack.c.b16 %v170, %v169
  %175 = vmatprep.subr.bf16.mxu0 0
  %176 = vmatpush1.bf16.msra.mxu0 %v171
  %177 = vmatprep.subr.bf16.mxu0 0
  %178 = vmatpush1.bf16.msra.mxu0 %v172
  %179 = vmatprep.subr.bf16.mxu0 0
  %180 = vmatpush1.bf16.msra.mxu0 0
  %181 = vmatprep.subr.bf16.mxu0 0
  %182 = vmatpush1.bf16.msra.mxu0 0
  %183 = vmatprep.subr.bf16.mxu0 0
  %184 = vmatpush1.bf16.msra.mxu0 0
  %185 = vmatprep.subr.bf16.mxu0 0
  %186 = vmatpush1.bf16.msra.mxu0 0
  %187 = vmatprep.subr.bf16.mxu0 0
  %188 = vmatpush1.bf16.msra.mxu0 0
  %189 = vmatprep.subr.bf16.mxu0 0
  %190 = vmatpush1.bf16.msra.mxu0 0
  %191 = vmatprep.subr.bf16.mxu0 0
  %192 = vmatpush1.bf16.msra.mxu0 0
  %193 = vmatprep.subr.bf16.mxu0 0
  %194 = vmatpush1.bf16.msra.mxu0 0
  %195 = vmatprep.subr.bf16.mxu0 0
  %196 = vmatpush1.bf16.msra.mxu0 0
  %197 = vmatprep.subr.bf16.mxu0 0
  %198 = vmatpush1.bf16.msra.mxu0 0
  %199 = vmatprep.subr.bf16.mxu0 0
  %200 = vmatpush1.bf16.msra.mxu0 0
  %201 = vmatprep.subr.bf16.mxu0 0
  %202 = vmatpush1.bf16.msra.mxu0 0
  %203 = vmatprep.subr.bf16.mxu0 0
  %204 = vmatpush1.bf16.msra.mxu0 0
  %205 = vmatprep.subr.bf16.mxu0 0
  %206 = vmatpush1.bf16.msra.mxu0 0
  %207 = vmatprep.mubr.bf16.mxu0 0
  %208 = vmatmul.mubr.bf16.gmra.mrb[0].mxu0 %v109
  %v209 = vpop.f32.mrb[0].mxu0
  %v210 = vadd.f32 %v161, %v209
  %v211 = vpop.f32.mrb[0].mxu0
  %v212 = vpop.f32.mrb[0].mxu0
  %v213 = vadd.f32 %v161, %v212
  %v214 = vpop.f32.mrb[0].mxu0
  %215 = vdwg.mxu0
  %v216 = vld [vmem:[%s7] sm:$0xf]
  %v217 = vld [vmem:[%s7 + $0x4] sm:$0xf]
  %v218 = vld [vmem:[%s7 + $0x8] sm:$0xf]
  %v219 = vld [vmem:[%s7 + $0xc] sm:$0xf]
  %v220 = vld [vmem:[%s8] sm:$0x1]
  %v222 = vlaneseq
  %v223 = vshrl.u32 %v222, 7
  %v224 = vsub.s32 0, %v223
  %v225 = vrot.slane %v220, %v224
  %v231 = vunpack.c.l.b16 %v216
  %v232 = vunpack.c.l.b16 %v217
  %v233 = vunpack.c.l.b16 %v218
  %v234 = vunpack.c.l.b16 %v219
  %v235 = vpack.c.b16 %v232, %v231
  %v236 = vpack.c.b16 %v234, %v233
  %239 = vmatprep.subr.bf16.mxu0 0
  %240 = vmatpush1.bf16.msra.mxu0 %v235
  %241 = vmatprep.subr.bf16.mxu0 0
  %242 = vmatpush1.bf16.msra.mxu0 %v236
  %243 = vmatprep.subr.bf16.mxu0 0
  %244 = vmatpush1.bf16.msra.mxu0 0
  %245 = vmatprep.subr.bf16.mxu0 0
  %246 = vmatpush1.bf16.msra.mxu0 0
  %247 = vmatprep.subr.bf16.mxu0 0
  %248 = vmatpush1.bf16.msra.mxu0 0
  %249 = vmatprep.subr.bf16.mxu0 0
  %250 = vmatpush1.bf16.msra.mxu0 0
  %251 = vmatprep.subr.bf16.mxu0 0
  %252 = vmatpush1.bf16.msra.mxu0 0
  %253 = vmatprep.subr.bf16.mxu0 0
  %254 = vmatpush1.bf16.msra.mxu0 0
  %255 = vmatprep.subr.bf16.mxu0 0
  %256 = vmatpush1.bf16.msra.mxu0 0
  %257 = vmatprep.subr.bf16.mxu0 0
  %258 = vmatpush1.bf16.msra.mxu0 0
  %259 = vmatprep.subr.bf16.mxu0 0
  %260 = vmatpush1.bf16.msra.mxu0 0
  %261 = vmatprep.subr.bf16.mxu0 0
  %262 = vmatpush1.bf16.msra.mxu0 0
  %263 = vmatprep.subr.bf16.mxu0 0
  %264 = vmatpush1.bf16.msra.mxu0 0
  %265 = vmatprep.subr.bf16.mxu0 0
  %266 = vmatpush1.bf16.msra.mxu0 0
  %267 = vmatprep.subr.bf16.mxu0 0
  %268 = vmatpush1.bf16.msra.mxu0 0
  %269 = vmatprep.subr.bf16.mxu0 0
  %270 = vmatpush1.bf16.msra.mxu0 0
  %271 = vmatprep.mubr.bf16.mxu0 0
  %272 = vmatmul.mubr.bf16.gmra.mrb[0].mxu0 %v109
  %v273 = vpop.f32.mrb[0].mxu0
  %v274 = vadd.f32 %v225, %v273
  %v275 = vpop.f32.mrb[0].mxu0
  %v276 = vpop.f32.mrb[0].mxu0
  %v277 = vadd.f32 %v225, %v276
  %v278 = vpop.f32.mrb[0].mxu0
  %279 = vdwg.mxu0
  %v280 = vmul.f32 %v146, 0.35355338
  %v281 = vmul.f32 %v149, 0.35355338
  %v282 = vpack.c.bf16 %v281, %v280
  %v284 = vunpack.c.l.b16 %v282
  %v285 = vunpack.c.h.b16 %v282
  %v286 = vpack.c.b16 %v284, %v284
  %v287 = vpack.c.b16 %v285, %v285
  %vm290 = vcmask 257024
  %291 = vst.msk [vmem:[%s9] sm:$0xf] %vm290, %v286
  %292 = vst.msk [vmem:[%s9 + $0x4] sm:$0xf] %vm290, %v287
  %v293 = vpack.c.bf16 %v213, %v210
  %v295 = vunpack.c.l.b16 %v293
  %v296 = vunpack.c.h.b16 %v293
  %v297 = vpack.c.b16 %v295, %v295
  %v298 = vpack.c.b16 %v296, %v296
  %301 = vst.msk [vmem:[%s10] sm:$0xf] %vm290, %v297
  %302 = vst.msk [vmem:[%s10 + $0x4] sm:$0xf] %vm290, %v298
  %v303 = vpack.c.bf16 %v277, %v274
  %v305 = vunpack.c.l.b16 %v303
  %v306 = vunpack.c.h.b16 %v303
  %v307 = vpack.c.b16 %v305, %v305
  %v308 = vpack.c.b16 %v306, %v306
  %311 = vst.msk [vmem:[%s11] sm:$0xf] %vm290, %v307
  %312 = vst.msk [vmem:[%s11 + $0x4] sm:$0xf] %vm290, %v308
  // Predicated region
  $region38: #{decoder_forward.6} parent=0 // pred_check
    _
  $region39: #{decoder_forward.6} parent=0 // pred_check_branch
    %314 = sbr.rel (0) target = $region41
  $region40: #{decoder_forward.6} parent=0 // pred_region
    _
  $region41: #{decoder_forward.6} parent=0 // pred_fallthru
    _
  // Predicated region
  $region42: #{decoder_forward.6} parent=0 // pred_check
    _
  $region43: #{decoder_forward.6} parent=0 // pred_check_branch
    %316 = sbr.rel (0) target = $region45
  $region44: #{decoder_forward.6} parent=0 // pred_region
    _
  $region45: #{decoder_forward.6} parent=0 // pred_fallthru
    _
  // Predicated region
  $region46: #{decoder_forward.6} parent=0 // pred_check
    _
  $region47: #{decoder_forward.6} parent=0 // pred_check_branch
    %318 = sbr.rel (0) target = $region49
  $region48: #{decoder_forward.6} parent=0 // pred_region
    _
  $region49: #{decoder_forward.6} parent=0 // pred_fallthru
    _
  // Predicated region
  $region50: #{decoder_forward.6} parent=0 // pred_check
    _
  $region51: #{decoder_forward.6} parent=0 // pred_check_branch
    %320 = sbr.rel (0) target = $region53
  $region52: #{decoder_forward.6} parent=0 // pred_region
    _
  $region53: #{decoder_forward.6} parent=0 // pred_fallthru
    _
  // Predicated region
  $region54: #{decoder_forward.6} parent=0 // pred_check
    _
  $region55: #{decoder_forward.6} parent=0 // pred_check_branch
    %322 = sbr.rel (0) target = $region57
  $region56: #{decoder_forward.6} parent=0 // pred_region
    _
  $region57: #{decoder_forward.6} parent=0 // pred_fallthru
    _
  // Predicated region
  $region58: #{decoder_forward.6} parent=0 // pred_check
    _
  $region59: #{decoder_forward.6} parent=0 // pred_check_branch
    %324 = sbr.rel (0) target = $region61
  $region60: #{decoder_forward.6} parent=0 // pred_region
    _
  $region61: #{decoder_forward.6} parent=0 // pred_fallthru
    _

// kernel: decoder_forward.8
$region0: #{decoder_forward.8}
  #allocation0 [shape = 'u32[]', space=smem, size = 0x4, offset = 0x4, fixed_abs, tag = 'smem constant byte address 0x4 - core index']
  #allocation1 [shape = 'u32[144,128]{1,0:T(1,128)}', space=vmem, size = 0x12000, scoped, tag = 'internal scratch']
  #allocation2 [shape = 'bf16[16,32]{1,0:T(16,128)(2,1)}', space=vmem, size = 0x1000, scoped, tag = 'scratch operand']
  %s0 = inlined_call_operand.vmem [shape: f32[16,32], index: 0, kind: input, shape index: {}]
  %s1 = inlined_call_operand.vmem [shape: bf16[16,32], index: 1, kind: input, shape index: {}]
  %s2 = inlined_call_operand.vmem [shape: bf16[32,32], index: 2, kind: input, shape index: {}]
  %s3 = inlined_call_operand.vmem [shape: f32[1,32], index: 3, kind: input, shape index: {}]
  %s4 = inlined_call_operand.vmem [shape: f32[1,32], index: 4, kind: input, shape index: {}]
  %s5 = inlined_call_operand.vmem [shape: f32[1,32], index: 5, kind: input, shape index: {}]
  %s6 = inlined_call_operand.vmem [shape: bf16[32,64], index: 6, kind: input, shape index: {}]
  %s7 = inlined_call_operand.vmem [shape: f32[1,64], index: 7, kind: input, shape index: {}]
  %s8 = inlined_call_operand.vmem [shape: bf16[64,32], index: 8, kind: input, shape index: {}]
  %s9 = inlined_call_operand.vmem [shape: f32[1,32], index: 9, kind: input, shape index: {}]
  %s10 = inlined_call_operand.vmem [shape: f32[16,32], index: 10, kind: output, shape index: {}]
  %s11 = sld [smem:[#allocation0]]
  $region54: #{decoder_forward.8} parent=0
    _
  %s13 = ssub.s32 1, %s11
  %s14 = scalar_select 0, %s13, %s11
  // Predicated region
  $region2: #{decoder_forward.8} parent=0 // pred_check
    _
  $region3: #{decoder_forward.8} parent=0 // pred_check_branch
    %16 = sbr.rel (0) target = $region5
  $region4: #{decoder_forward.8} parent=0 // pred_region
    _
  $region5: #{decoder_forward.8} parent=0 // pred_fallthru
    _
  // Predicated region
  $region6: #{decoder_forward.8} parent=0 // pred_check
    _
  $region7: #{decoder_forward.8} parent=0 // pred_check_branch
    %18 = sbr.rel (0) target = $region9
  $region8: #{decoder_forward.8} parent=0 // pred_region
    _
  $region9: #{decoder_forward.8} parent=0 // pred_fallthru
    _
  // Predicated region
  $region10: #{decoder_forward.8} parent=0 // pred_check
    _
  $region11: #{decoder_forward.8} parent=0 // pred_check_branch
    %20 = sbr.rel (0) target = $region13
  $region12: #{decoder_forward.8} parent=0 // pred_region
    _
  $region13: #{decoder_forward.8} parent=0 // pred_fallthru
    _
  // Predicated region
  $region14: #{decoder_forward.8} parent=0 // pred_check
    _
  $region15: #{decoder_forward.8} parent=0 // pred_check_branch
    %22 = sbr.rel (0) target = $region17
  $region16: #{decoder_forward.8} parent=0 // pred_region
    _
  $region17: #{decoder_forward.8} parent=0 // pred_fallthru
    _
  // Predicated region
  $region18: #{decoder_forward.8} parent=0 // pred_check
    _
  $region19: #{decoder_forward.8} parent=0 // pred_check_branch
    %24 = sbr.rel (0) target = $region21
  $region20: #{decoder_forward.8} parent=0 // pred_region
    _
  $region21: #{decoder_forward.8} parent=0 // pred_fallthru
    _
  // Predicated region
  $region22: #{decoder_forward.8} parent=0 // pred_check
    _
  $region23: #{decoder_forward.8} parent=0 // pred_check_branch
    %26 = sbr.rel (0) target = $region25
  $region24: #{decoder_forward.8} parent=0 // pred_region
    _
  $region25: #{decoder_forward.8} parent=0 // pred_fallthru
    _
  // Predicated region
  $region26: #{decoder_forward.8} parent=0 // pred_check
    _
  $region27: #{decoder_forward.8} parent=0 // pred_check_branch
    %28 = sbr.rel (0) target = $region29
  $region28: #{decoder_forward.8} parent=0 // pred_region
    _
  $region29: #{decoder_forward.8} parent=0 // pred_fallthru
    _
  // Predicated region
  $region30: #{decoder_forward.8} parent=0 // pred_check
    _
  $region31: #{decoder_forward.8} parent=0 // pred_check_branch
    %30 = sbr.rel (0) target = $region33
  $region32: #{decoder_forward.8} parent=0 // pred_region
    _
  $region33: #{decoder_forward.8} parent=0 // pred_fallthru
    _
  // Predicated region
  $region34: #{decoder_forward.8} parent=0 // pred_check
    _
  $region35: #{decoder_forward.8} parent=0 // pred_check_branch
    %32 = sbr.rel (0) target = $region37
  $region36: #{decoder_forward.8} parent=0 // pred_region
    _
  $region37: #{decoder_forward.8} parent=0 // pred_fallthru
    _
  // Predicated region
  $region38: #{decoder_forward.8} parent=0 // pred_check
    _
  $region39: #{decoder_forward.8} parent=0 // pred_check_branch
    %34 = sbr.rel (0) target = $region41
  $region40: #{decoder_forward.8} parent=0 // pred_region
    _
  $region41: #{decoder_forward.8} parent=0 // pred_fallthru
    _
  %p36 = scmp.eq.s32.totalorder 0, 0
  // Predicated region
  $region42: #{decoder_forward.8} parent=0 // pred_check
    %p37 = pneg %p36
  $region43: #{decoder_forward.8} parent=0 // pred_check_branch
    %39 = sbr.rel (%p37) target = $region45
  $region44: #{decoder_forward.8} parent=0 // pred_region
    %v40 = vld [vmem:[%s1] sm:$0xf]
    %v41 = vld [vmem:[%s1 + $0x4] sm:$0xf]
    %v42 = vld [vmem:[%s2] sm:$0xf]
    %v43 = vld [vmem:[%s2 + $0x4] sm:$0xf]
    %v44 = vld [vmem:[%s2 + $0x8] sm:$0xf]
    %v45 = vld [vmem:[%s2 + $0xc] sm:$0xf]
    %v46 = vld [vmem:[%s3] sm:$0x1]
    %v48 = vlaneseq
    %v49 = vshrl.u32 %v48, 7
    %v50 = vsub.s32 0, %v49
    %v51 = vrot.slane %v46, %v50
    %v55 = vunpack.c.l.b16 %v40
    %v56 = vunpack.c.l.b16 %v41
    %v57 = vpack.c.b16 %v56, %v55
    %v62 = vunpack.c.l.b16 %v42
    %v63 = vunpack.c.l.b16 %v43
    %v64 = vunpack.c.l.b16 %v44
    %v65 = vunpack.c.l.b16 %v45
    %v66 = vpack.c.b16 %v63, %v62
    %v67 = vpack.c.b16 %v65, %v64
    %vm70 = vcmask 261120
    %v72 = vsel %vm70, %v57, 0
    %74 = vmatprep.subr.bf16.mxu0 0
    %75 = vmatpush1.bf16.msra.mxu0 %v66
    %76 = vmatprep.subr.bf16.mxu0 0
    %77 = vmatpush1.bf16.msra.mxu0 %v67
    %78 = vmatprep.subr.bf16.mxu0 0
    %79 = vmatpush1.bf16.msra.mxu0 0
    %80 = vmatprep.subr.bf16.mxu0 0
    %81 = vmatpush1.bf16.msra.mxu0 0
    %82 = vmatprep.subr.bf16.mxu0 0
    %83 = vmatpush1.bf16.msra.mxu0 0
    %84 = vmatprep.subr.bf16.mxu0 0
    %85 = vmatpush1.bf16.msra.mxu0 0
    %86 = vmatprep.subr.bf16.mxu0 0
    %87 = vmatpush1.bf16.msra.mxu0 0
    %88 = vmatprep.subr.bf16.mxu0 0
    %89 = vmatpush1.bf16.msra.mxu0 0
    %90 = vmatprep.subr.bf16.mxu0 0
    %91 = vmatpush1.bf16.msra.mxu0 0
    %92 = vmatprep.subr.bf16.mxu0 0
    %93 = vmatpush1.bf16.msra.mxu0 0
    %94 = vmatprep.subr.bf16.mxu0 0
    %95 = vmatpush1.bf16.msra.mxu0 0
    %96 = vmatprep.subr.bf16.mxu0 0
    %97 = vmatpush1.bf16.msra.mxu0 0
    %98 = vmatprep.subr.bf16.mxu0 0
    %99 = vmatpush1.bf16.msra.mxu0 0
    %100 = vmatprep.subr.bf16.mxu0 0
    %101 = vmatpush1.bf16.msra.mxu0 0
    %102 = vmatprep.subr.bf16.mxu0 0
    %103 = vmatpush1.bf16.msra.mxu0 0
    %104 = vmatprep.subr.bf16.mxu0 0
    %105 = vmatpush1.bf16.msra.mxu0 0
    %106 = vmatprep.mubr.bf16.mxu0 0
    %107 = vmatmul.mubr.bf16.gmra.mrb[0].mxu0 %v72
    %v108 = vpop.f32.mrb[0].mxu0
    %v109 = vadd.f32 %v51, %v108
    %v110 = vpop.f32.mrb[0].mxu0
    %v111 = vpop.f32.mrb[0].mxu0
    %v112 = vadd.f32 %v51, %v111
    %v113 = vpop.f32.mrb[0].mxu0
    %114 = vdwg.mxu0
    %v115 = vld [vmem:[%s0] sm:$0xff]
    %v116 = vld [vmem:[%s0 + $0x8] sm:$0xff]
    %v117 = vadd.f32 %v115, %v109
    %v118 = vadd.f32 %v116, %v112
    %v119 = vld [vmem:[%s4] sm:$0x1]
    %v120 = vld [vmem:[%s5] sm:$0x1]
    %v121 = vsel %vm70, %v117, 0.0
    %122 = vadd.xlane.f32.xlu0 %v121
    %v123 = vpop.xlane.xlu0 %122
    %v124 = vsel %vm70, %v118, 0.0
    %125 = vadd.xlane.f32.xlu0 %v124
    %v126 = vpop.xlane.xlu0 %125
    %v127 = vrcp.pop 32.0
    %v128 = vmul.f32 %v123, %v127
    %v129 = vmul.f32 %v126, %v127
    %v130 = vsub.f32 %v117, %v128
    %v131 = vsub.f32 %v118, %v129
    %v132 = vmul.f32 %v130, %v130
    %v133 = vmul.f32 %v131, %v131
    %v134 = vsel %vm70, %v132, 0.0
    %135 = vadd.xlane.f32.xlu0 %v134
    %v136 = vpop.xlane.xlu0 %135
    %v137 = vsel %vm70, %v133, 0.0
    %138 = vadd.xlane.f32.xlu0 %v137
    %v139 = vpop.xlane.xlu0 %138
    %v140 = vmul.f32 %v136, %v127
    %v141 = vmul.f32 %v139, %v127
    %v142 = vadd.f32 %v140, 1e-05
    %v143 = vadd.f32 %v141, 1e-05
    %v144 = vrsqrt.pop %v142
    %v145 = vrsqrt.pop %v143
    %v146 = vmul.f32 %v130, %v144
    %v147 = vmul.f32 %v131, %v145
    %v149 = vlaneseq
    %v150 = vshrl.u32 %v149, 7
    %v151 = vsub.s32 0, %v150
    %v152 = vrot.slane %v119, %v151
    %v154 = vmul.f32 %v146, %v152
    %v155 = vmul.f32 %v147, %v152
    %v157 = vlaneseq
    %v158 = vshrl.u32 %v157, 7
    %v159 = vsub.s32 0, %v158
    %v160 = vrot.slane %v120, %v159
    %v162 = vadd.f32 %v154, %v160
    %v163 = vadd.f32 %v155, %v160
    %v164 = vpack.c.bf16 %v163, %v162
    %165 = vst.msk [vmem:[#allocation2] sm:$0xff] %vm70, %v164
    %v166 = vld [vmem:[%s9] sm:$0x1]
    %v168 = vlaneseq
    %v169 = vshrl.u32 %v168, 7
    %v170 = vsub.s32 0, %v169
    %v171 = vrot.slane %v166, %v170
    %v173 = vadd.f32 %v117, %v171
    %v174 = vadd.f32 %v118, %v171
    %175 = vst.msk [vmem:[%s10] sm:$0xff] %vm70, %v173
    %176 = vst.msk [vmem:[%s10 + $0x8] sm:$0xff] %vm70, %v174
  $region45: #{decoder_forward.8} parent=0 // pred_fallthru
    _
  %v177 = vld [vmem:[#allocation2] sm:$0xff]
  %v178 = vld [vmem:[%s6] sm:$0xf]
  %v179 = vld [vmem:[%s6 + $0x4] sm:$0xf]
  %v180 = vld [vmem:[%s6 + $0x8] sm:$0xf]
  %v181 = vld [vmem:[%s6 + $0xc] sm:$0xf]
  %v182 = vld [vmem:[%s7] sm:$0x1]
  %v184 = vlaneseq
  %v185 = vshrl.u32 %v184, 7
  %v186 = vsub.s32 0, %v185
  %v187 = vrot.slane %v182, %v186
  %v193 = vunpack.c.l.b16 %v178
  %v194 = vunpack.c.l.b16 %v179
  %v195 = vunpack.c.l.b16 %v180
  %v196 = vunpack.c.l.b16 %v181
  %v197 = vpack.c.b16 %v194, %v193
  %v198 = vpack.c.b16 %v196, %v195
  %vm201 = vcmask 261120
  %v203 = vsel %vm201, %v177, 0
  %205 = vmatprep.subr.bf16.mxu0 0
  %206 = vmatpush1.bf16.msra.mxu0 %v197
  %207 = vmatprep.subr.bf16.mxu0 0
  %208 = vmatpush1.bf16.msra.mxu0 %v198
  %209 = vmatprep.subr.bf16.mxu0 0
  %210 = vmatpush1.bf16.msra.mxu0 0
  %211 = vmatprep.subr.bf16.mxu0 0
  %212 = vmatpush1.bf16.msra.mxu0 0
  %213 = vmatprep.subr.bf16.mxu0 0
  %214 = vmatpush1.bf16.msra.mxu0 0
  %215 = vmatprep.subr.bf16.mxu0 0
  %216 = vmatpush1.bf16.msra.mxu0 0
  %217 = vmatprep.subr.bf16.mxu0 0
  %218 = vmatpush1.bf16.msra.mxu0 0
  %219 = vmatprep.subr.bf16.mxu0 0
  %220 = vmatpush1.bf16.msra.mxu0 0
  %221 = vmatprep.subr.bf16.mxu0 0
  %222 = vmatpush1.bf16.msra.mxu0 0
  %223 = vmatprep.subr.bf16.mxu0 0
  %224 = vmatpush1.bf16.msra.mxu0 0
  %225 = vmatprep.subr.bf16.mxu0 0
  %226 = vmatpush1.bf16.msra.mxu0 0
  %227 = vmatprep.subr.bf16.mxu0 0
  %228 = vmatpush1.bf16.msra.mxu0 0
  %229 = vmatprep.subr.bf16.mxu0 0
  %230 = vmatpush1.bf16.msra.mxu0 0
  %231 = vmatprep.subr.bf16.mxu0 0
  %232 = vmatpush1.bf16.msra.mxu0 0
  %233 = vmatprep.subr.bf16.mxu0 0
  %234 = vmatpush1.bf16.msra.mxu0 0
  %235 = vmatprep.subr.bf16.mxu0 0
  %236 = vmatpush1.bf16.msra.mxu0 0
  %237 = vmatprep.mubr.bf16.mxu0 0
  %238 = vmatmul.mubr.bf16.gmra.mrb[0].mxu0 %v203
  %v239 = vpop.f32.mrb[0].mxu0
  %v240 = vadd.f32 %v187, %v239
  %v241 = vpop.f32.mrb[0].mxu0
  %v242 = vpop.f32.mrb[0].mxu0
  %v243 = vadd.f32 %v187, %v242
  %v244 = vpop.f32.mrb[0].mxu0
  %245 = vdwg.mxu0
  %v246 = vmax.f32 %v240, 0.0
  %v247 = vmax.f32 %v243, 0.0
  %v248 = vld [vmem:[%s10] sm:$0xff]
  %v249 = vld [vmem:[%s10 + $0x8] sm:$0xff]
  %v250 = vpack.c.bf16 %v247, %v246
  %v251 = vld [vmem:[%s8] sm:$0xf]
  %v252 = vld [vmem:[%s8 + $0x4] sm:$0xf]
  %v253 = vld [vmem:[%s8 + $0x8] sm:$0xf]
  %v254 = vld [vmem:[%s8 + $0xc] sm:$0xf]
  %v255 = vld [vmem:[%s8 + $0x10] sm:$0xf]
  %v256 = vld [vmem:[%s8 + $0x14] sm:$0xf]
  %v257 = vld [vmem:[%s8 + $0x18] sm:$0xf]
  %v258 = vld [vmem:[%s8 + $0x1c] sm:$0xf]
  %v267 = vunpack.c.l.b16 %v251
  %v268 = vunpack.c.l.b16 %v252
  %v269 = vunpack.c.l.b16 %v253
  %v270 = vunpack.c.l.b16 %v254
  %v271 = vunpack.c.l.b16 %v255
  %v272 = vunpack.c.l.b16 %v256
  %v273 = vunpack.c.l.b16 %v257
  %v274 = vunpack.c.l.b16 %v258
  %v275 = vpack.c.b16 %v268, %v267
  %v276 = vpack.c.b16 %v270, %v269
  %v277 = vpack.c.b16 %v272, %v271
  %v278 = vpack.c.b16 %v274, %v273
  %vm283 = vcmask 523264
  %v285 = vsel %vm283, %v250, 0
  %287 = vmatprep.subr.bf16.mxu0 0
  %288 = vmatpush1.bf16.msra.mxu0 %v275
  %289 = vmatprep.subr.bf16.mxu0 0
  %290 = vmatpush1.bf16.msra.mxu0 %v276
  %291 = vmatprep.subr.bf16.mxu0 0
  %292 = vmatpush1.bf16.msra.mxu0 %v277
  %293 = vmatprep.subr.bf16.mxu0 0
  %294 = vmatpush1.bf16.msra.mxu0 %v278
  %295 = vmatprep.subr.bf16.mxu0 0
  %296 = vmatpush1.bf16.msra.mxu0 0
  %297 = vmatprep.subr.bf16.mxu0 0
  %298 = vmatpush1.bf16.msra.mxu0 0
  %299 = vmatprep.subr.bf16.mxu0 0
  %300 = vmatpush1.bf16.msra.mxu0 0
  %301 = vmatprep.subr.bf16.mxu0 0
  %302 = vmatpush1.bf16.msra.mxu0 0
  %303 = vmatprep.subr.bf16.mxu0 0
  %304 = vmatpush1.bf16.msra.mxu0 0
  %305 = vmatprep.subr.bf16.mxu0 0
  %306 = vmatpush1.bf16.msra.mxu0 0
  %307 = vmatprep.subr.bf16.mxu0 0
  %308 = vmatpush1.bf16.msra.mxu0 0
  %309 = vmatprep.subr.bf16.mxu0 0
  %310 = vmatpush1.bf16.msra.mxu0 0
  %311 = vmatprep.subr.bf16.mxu0 0
  %312 = vmatpush1.bf16.msra.mxu0 0
  %313 = vmatprep.subr.bf16.mxu0 0
  %314 = vmatpush1.bf16.msra.mxu0 0
  %315 = vmatprep.subr.bf16.mxu0 0
  %316 = vmatpush1.bf16.msra.mxu0 0
  %317 = vmatprep.subr.bf16.mxu0 0
  %318 = vmatpush1.bf16.msra.mxu0 0
  %319 = vmatprep.mubr.bf16.mxu0 0
  %320 = vmatmul.mubr.bf16.gmra.mrb[0].mxu0 %v285
  %v321 = vpop.f32.mrb[0].mxu0
  %v322 = vadd.f32 0.0, %v321
  %v323 = vpop.f32.mrb[0].mxu0
  %v324 = vpop.f32.mrb[0].mxu0
  %v325 = vadd.f32 0.0, %v324
  %v326 = vpop.f32.mrb[0].mxu0
  %327 = vdwg.mxu0
  %v328 = vadd.f32 %v248, %v322
  %v329 = vadd.f32 %v249, %v325
  %330 = vst.msk [vmem:[%s10] sm:$0xff] %vm201, %v328
  %331 = vst.msk [vmem:[%s10 + $0x8] sm:$0xff] %vm201, %v329
  // Predicated region
  $region46: #{decoder_forward.8} parent=0 // pred_check
    _
  $region47: #{decoder_forward.8} parent=0 // pred_check_branch
    %333 = sbr.rel (0) target = $region49
  $region48: #{decoder_forward.8} parent=0 // pred_region
    _
  $region49: #{decoder_forward.8} parent=0 // pred_fallthru
    _
  // Predicated region
  $region50: #{decoder_forward.8} parent=0 // pred_check
    _
  $region51: #{decoder_forward.8} parent=0 // pred_check_branch
    %335 = sbr.rel (0) target = $region53
  $region52: #{decoder_forward.8} parent=0 // pred_region
    _
  $region53: #{decoder_forward.8} parent=0 // pred_fallthru
    _

// kernel: decoder_forward.11
$region0: #{decoder_forward.11}
  #allocation0 [shape = 'u32[]', space=smem, size = 0x4, offset = 0x4, fixed_abs, tag = 'smem constant byte address 0x4 - core index']
  #allocation1 [shape = 'u32[144,128]{1,0:T(1,128)}', space=vmem, size = 0x12000, scoped, tag = 'internal scratch']
  #allocation2 [shape = 'bf16[16,32]{1,0:T(16,128)(2,1)}', space=vmem, size = 0x1000, scoped, tag = 'scratch operand']
  %s0 = inlined_call_operand.vmem [shape: f32[16,32], index: 0, kind: input, shape index: {}]
  %s1 = inlined_call_operand.vmem [shape: bf16[16,32], index: 1, kind: input, shape index: {}]
  %s2 = inlined_call_operand.vmem [shape: bf16[32,32], index: 2, kind: input, shape index: {}]
  %s3 = inlined_call_operand.vmem [shape: f32[1,32], index: 3, kind: input, shape index: {}]
  %s4 = inlined_call_operand.vmem [shape: f32[1,32], index: 4, kind: input, shape index: {}]
  %s5 = inlined_call_operand.vmem [shape: f32[1,32], index: 5, kind: input, shape index: {}]
  %s6 = inlined_call_operand.vmem [shape: bf16[32,64], index: 6, kind: input, shape index: {}]
  %s7 = inlined_call_operand.vmem [shape: f32[1,64], index: 7, kind: input, shape index: {}]
  %s8 = inlined_call_operand.vmem [shape: bf16[64,32], index: 8, kind: input, shape index: {}]
  %s9 = inlined_call_operand.vmem [shape: f32[1,32], index: 9, kind: input, shape index: {}]
  %s10 = inlined_call_operand.vmem [shape: f32[1,32], index: 10, kind: input, shape index: {}]
  %s11 = inlined_call_operand.vmem [shape: f32[1,32], index: 11, kind: input, shape index: {}]
  %s12 = inlined_call_operand.hbm [shape: f32[16,32], index: 12, kind: output, shape index: {}]
  %s13 = sld [smem:[#allocation0]]
  $region66: #{decoder_forward.11} parent=0
    _
  %s15 = ssub.s32 1, %s13
  %s16 = scalar_select 0, %s15, %s13
  $region1: #{decoder_forward.11} parent=0
    #allocation3 [shape = 'u8[8192]{0}', space=vmem, size = 0x2000, scoped, tag = 'output window, operand 0, single buffered']
    #allocation4 [shape = 's32[1]{0}', space=sflag, size = 0x4, scoped, tag = 'scoped memory for decoder_forward.11']
    %17 = vsyncpa [#allocation4], 0
    // Predicated region
    $region2: #{decoder_forward.11} parent=1 // pred_check
      _
    $region3: #{decoder_forward.11} parent=1 // pred_check_branch
      %19 = sbr.rel (0) target = $region5
    $region4: #{decoder_forward.11} parent=1 // pred_region
      _
    $region5: #{decoder_forward.11} parent=1 // pred_fallthru
      _
    // Predicated region
    $region6: #{decoder_forward.11} parent=1 // pred_check
      _
    $region7: #{decoder_forward.11} parent=1 // pred_check_branch
      %21 = sbr.rel (0) target = $region9
    $region8: #{decoder_forward.11} parent=1 // pred_region
      _
    $region9: #{decoder_forward.11} parent=1 // pred_fallthru
      _
    // Predicated region
    $region10: #{decoder_forward.11} parent=1 // pred_check
      _
    $region11: #{decoder_forward.11} parent=1 // pred_check_branch
      %23 = sbr.rel (0) target = $region13
    $region12: #{decoder_forward.11} parent=1 // pred_region
      _
    $region13: #{decoder_forward.11} parent=1 // pred_fallthru
      _
    // Predicated region
    $region14: #{decoder_forward.11} parent=1 // pred_check
      _
    $region15: #{decoder_forward.11} parent=1 // pred_check_branch
      %25 = sbr.rel (0) target = $region17
    $region16: #{decoder_forward.11} parent=1 // pred_region
      _
    $region17: #{decoder_forward.11} parent=1 // pred_fallthru
      _
    // Predicated region
    $region18: #{decoder_forward.11} parent=1 // pred_check
      _
    $region19: #{decoder_forward.11} parent=1 // pred_check_branch
      %27 = sbr.rel (0) target = $region21
    $region20: #{decoder_forward.11} parent=1 // pred_region
      _
    $region21: #{decoder_forward.11} parent=1 // pred_fallthru
      _
    // Predicated region
    $region22: #{decoder_forward.11} parent=1 // pred_check
      _
    $region23: #{decoder_forward.11} parent=1 // pred_check_branch
      %29 = sbr.rel (0) target = $region25
    $region24: #{decoder_forward.11} parent=1 // pred_region
      _
    $region25: #{decoder_forward.11} parent=1 // pred_fallthru
      _
    // Predicated region
    $region26: #{decoder_forward.11} parent=1 // pred_check
      _
    $region27: #{decoder_forward.11} parent=1 // pred_check_branch
      %31 = sbr.rel (0) target = $region29
    $region28: #{decoder_forward.11} parent=1 // pred_region
      _
    $region29: #{decoder_forward.11} parent=1 // pred_fallthru
      _
    // Predicated region
    $region30: #{decoder_forward.11} parent=1 // pred_check
      _
    $region31: #{decoder_forward.11} parent=1 // pred_check_branch
      %33 = sbr.rel (0) target = $region33
    $region32: #{decoder_forward.11} parent=1 // pred_region
      _
    $region33: #{decoder_forward.11} parent=1 // pred_fallthru
      _
    // Predicated region
    $region34: #{decoder_forward.11} parent=1 // pred_check
      _
    $region35: #{decoder_forward.11} parent=1 // pred_check_branch
      %35 = sbr.rel (0) target = $region37
    $region36: #{decoder_forward.11} parent=1 // pred_region
      _
    $region37: #{decoder_forward.11} parent=1 // pred_fallthru
      _
    // Predicated region
    $region38: #{decoder_forward.11} parent=1 // pred_check
      _
    $region39: #{decoder_forward.11} parent=1 // pred_check_branch
      %37 = sbr.rel (0) target = $region41
    $region40: #{decoder_forward.11} parent=1 // pred_region
      _
    $region41: #{decoder_forward.11} parent=1 // pred_fallthru
      _
    // Predicated region
    $region42: #{decoder_forward.11} parent=1 // pred_check
      _
    $region43: #{decoder_forward.11} parent=1 // pred_check_branch
      %39 = sbr.rel (0) target = $region45
    $region44: #{decoder_forward.11} parent=1 // pred_region
      _
    $region45: #{decoder_forward.11} parent=1 // pred_fallthru
      _
    // Predicated region
    $region46: #{decoder_forward.11} parent=1 // pred_check
      _
    $region47: #{decoder_forward.11} parent=1 // pred_check_branch
      %41 = sbr.rel (0) target = $region49
    $region48: #{decoder_forward.11} parent=1 // pred_region
      _
    $region49: #{decoder_forward.11} parent=1 // pred_fallthru
      _
    %p43 = scmp.eq.s32.totalorder 0, 0
    // Predicated region
    $region50: #{decoder_forward.11} parent=1 // pred_check
      %p44 = pneg %p43
    $region51: #{decoder_forward.11} parent=1 // pred_check_branch
      %46 = sbr.rel (%p44) target = $region53
    $region52: #{decoder_forward.11} parent=1 // pred_region
      %v47 = vld [vmem:[%s1] sm:$0xf]
      %v48 = vld [vmem:[%s1 + $0x4] sm:$0xf]
      %v49 = vld [vmem:[%s2] sm:$0xf]
      %v50 = vld [vmem:[%s2 + $0x4] sm:$0xf]
      %v51 = vld [vmem:[%s2 + $0x8] sm:$0xf]
      %v52 = vld [vmem:[%s2 + $0xc] sm:$0xf]
      %v53 = vld [vmem:[%s3] sm:$0x1]
      %v55 = vlaneseq
      %v56 = vshrl.u32 %v55, 7
      %v57 = vsub.s32 0, %v56
      %v58 = vrot.slane %v53, %v57
      %v62 = vunpack.c.l.b16 %v47
      %v63 = vunpack.c.l.b16 %v48
      %v64 = vpack.c.b16 %v63, %v62
      %v69 = vunpack.c.l.b16 %v49
      %v70 = vunpack.c.l.b16 %v50
      %v71 = vunpack.c.l.b16 %v51
      %v72 = vunpack.c.l.b16 %v52
      %v73 = vpack.c.b16 %v70, %v69
      %v74 = vpack.c.b16 %v72, %v71
      %vm77 = vcmask 261120
      %v79 = vsel %vm77, %v64, 0
      %81 = vmatprep.subr.bf16.mxu0 0
      %82 = vmatpush1.bf16.msra.mxu0 %v73
      %83 = vmatprep.subr.bf16.mxu0 0
      %84 = vmatpush1.bf16.msra.mxu0 %v74
      %85 = vmatprep.subr.bf16.mxu0 0
      %86 = vmatpush1.bf16.msra.mxu0 0
      %87 = vmatprep.subr.bf16.mxu0 0
      %88 = vmatpush1.bf16.msra.mxu0 0
      %89 = vmatprep.subr.bf16.mxu0 0
      %90 = vmatpush1.bf16.msra.mxu0 0
      %91 = vmatprep.subr.bf16.mxu0 0
      %92 = vmatpush1.bf16.msra.mxu0 0
      %93 = vmatprep.subr.bf16.mxu0 0
      %94 = vmatpush1.bf16.msra.mxu0 0
      %95 = vmatprep.subr.bf16.mxu0 0
      %96 = vmatpush1.bf16.msra.mxu0 0
      %97 = vmatprep.subr.bf16.mxu0 0
      %98 = vmatpush1.bf16.msra.mxu0 0
      %99 = vmatprep.subr.bf16.mxu0 0
      %100 = vmatpush1.bf16.msra.mxu0 0
      %101 = vmatprep.subr.bf16.mxu0 0
      %102 = vmatpush1.bf16.msra.mxu0 0
      %103 = vmatprep.subr.bf16.mxu0 0
      %104 = vmatpush1.bf16.msra.mxu0 0
      %105 = vmatprep.subr.bf16.mxu0 0
      %106 = vmatpush1.bf16.msra.mxu0 0
      %107 = vmatprep.subr.bf16.mxu0 0
      %108 = vmatpush1.bf16.msra.mxu0 0
      %109 = vmatprep.subr.bf16.mxu0 0
      %110 = vmatpush1.bf16.msra.mxu0 0
      %111 = vmatprep.subr.bf16.mxu0 0
      %112 = vmatpush1.bf16.msra.mxu0 0
      %113 = vmatprep.mubr.bf16.mxu0 0
      %114 = vmatmul.mubr.bf16.gmra.mrb[0].mxu0 %v79
      %v115 = vpop.f32.mrb[0].mxu0
      %v116 = vadd.f32 %v58, %v115
      %v117 = vpop.f32.mrb[0].mxu0
      %v118 = vpop.f32.mrb[0].mxu0
      %v119 = vadd.f32 %v58, %v118
      %v120 = vpop.f32.mrb[0].mxu0
      %121 = vdwg.mxu0
      %v122 = vld [vmem:[%s0] sm:$0xff]
      %v123 = vld [vmem:[%s0 + $0x8] sm:$0xff]
      %v124 = vadd.f32 %v122, %v116
      %v125 = vadd.f32 %v123, %v119
      %v126 = vld [vmem:[%s4] sm:$0x1]
      %v127 = vld [vmem:[%s5] sm:$0x1]
      %v128 = vsel %vm77, %v124, 0.0
      %129 = vadd.xlane.f32.xlu0 %v128
      %v130 = vpop.xlane.xlu0 %129
      %v131 = vsel %vm77, %v125, 0.0
      %132 = vadd.xlane.f32.xlu0 %v131
      %v133 = vpop.xlane.xlu0 %132
      %v134 = vrcp.pop 32.0
      %v135 = vmul.f32 %v130, %v134
      %v136 = vmul.f32 %v133, %v134
      %v137 = vsub.f32 %v124, %v135
      %v138 = vsub.f32 %v125, %v136
      %v139 = vmul.f32 %v137, %v137
      %v140 = vmul.f32 %v138, %v138
      %v141 = vsel %vm77, %v139, 0.0
      %142 = vadd.xlane.f32.xlu0 %v141
      %v143 = vpop.xlane.xlu0 %142
      %v144 = vsel %vm77, %v140, 0.0
      %145 = vadd.xlane.f32.xlu0 %v144
      %v146 = vpop.xlane.xlu0 %145
      %v147 = vmul.f32 %v143, %v134
      %v148 = vmul.f32 %v146, %v134
      %v149 = vadd.f32 %v147, 1e-05
      %v150 = vadd.f32 %v148, 1e-05
      %v151 = vrsqrt.pop %v149
      %v152 = vrsqrt.pop %v150
      %v153 = vmul.f32 %v137, %v151
      %v154 = vmul.f32 %v138, %v152
      %v156 = vlaneseq
      %v157 = vshrl.u32 %v156, 7
      %v158 = vsub.s32 0, %v157
      %v159 = vrot.slane %v126, %v158
      %v161 = vmul.f32 %v153, %v159
      %v162 = vmul.f32 %v154, %v159
      %v164 = vlaneseq
      %v165 = vshrl.u32 %v164, 7
      %v166 = vsub.s32 0, %v165
      %v167 = vrot.slane %v127, %v166
      %v169 = vadd.f32 %v161, %v167
      %v170 = vadd.f32 %v162, %v167
      %v171 = vpack.c.bf16 %v170, %v169
      %172 = vst.msk [vmem:[#allocation2] sm:$0xff] %vm77, %v171
      %v173 = vld [vmem:[%s9] sm:$0x1]
      %v175 = vlaneseq
      %v176 = vshrl.u32 %v175, 7
      %v177 = vsub.s32 0, %v176
      %v178 = vrot.slane %v173, %v177
      %v180 = vadd.f32 %v124, %v178
      %v181 = vadd.f32 %v125, %v178
      %182 = vst.msk [vmem:[#allocation3] sm:$0xff] %vm77, %v180
      %183 = vst.msk [vmem:[#allocation3 + $0x8] sm:$0xff] %vm77, %v181
    $region53: #{decoder_forward.11} parent=1 // pred_fallthru
      _
    %v184 = vld [vmem:[#allocation2] sm:$0xff]
    %v185 = vld [vmem:[%s6] sm:$0xf]
    %v186 = vld [vmem:[%s6 + $0x4] sm:$0xf]
    %v187 = vld [vmem:[%s6 + $0x8] sm:$0xf]
    %v188 = vld [vmem:[%s6 + $0xc] sm:$0xf]
    %v189 = vld [vmem:[%s7] sm:$0x1]
    %v191 = vlaneseq
    %v192 = vshrl.u32 %v191, 7
    %v193 = vsub.s32 0, %v192
    %v194 = vrot.slane %v189, %v193
    %v200 = vunpack.c.l.b16 %v185
    %v201 = vunpack.c.l.b16 %v186
    %v202 = vunpack.c.l.b16 %v187
    %v203 = vunpack.c.l.b16 %v188
    %v204 = vpack.c.b16 %v201, %v200
    %v205 = vpack.c.b16 %v203, %v202
    %vm208 = vcmask 261120
    %v210 = vsel %vm208, %v184, 0
    %212 = vmatprep.subr.bf16.mxu0 0
    %213 = vmatpush1.bf16.msra.mxu0 %v204
    %214 = vmatprep.subr.bf16.mxu0 0
    %215 = vmatpush1.bf16.msra.mxu0 %v205
    %216 = vmatprep.subr.bf16.mxu0 0
    %217 = vmatpush1.bf16.msra.mxu0 0
    %218 = vmatprep.subr.bf16.mxu0 0
    %219 = vmatpush1.bf16.msra.mxu0 0
    %220 = vmatprep.subr.bf16.mxu0 0
    %221 = vmatpush1.bf16.msra.mxu0 0
    %222 = vmatprep.subr.bf16.mxu0 0
    %223 = vmatpush1.bf16.msra.mxu0 0
    %224 = vmatprep.subr.bf16.mxu0 0
    %225 = vmatpush1.bf16.msra.mxu0 0
    %226 = vmatprep.subr.bf16.mxu0 0
    %227 = vmatpush1.bf16.msra.mxu0 0
    %228 = vmatprep.subr.bf16.mxu0 0
    %229 = vmatpush1.bf16.msra.mxu0 0
    %230 = vmatprep.subr.bf16.mxu0 0
    %231 = vmatpush1.bf16.msra.mxu0 0
    %232 = vmatprep.subr.bf16.mxu0 0
    %233 = vmatpush1.bf16.msra.mxu0 0
    %234 = vmatprep.subr.bf16.mxu0 0
    %235 = vmatpush1.bf16.msra.mxu0 0
    %236 = vmatprep.subr.bf16.mxu0 0
    %237 = vmatpush1.bf16.msra.mxu0 0
    %238 = vmatprep.subr.bf16.mxu0 0
    %239 = vmatpush1.bf16.msra.mxu0 0
    %240 = vmatprep.subr.bf16.mxu0 0
    %241 = vmatpush1.bf16.msra.mxu0 0
    %242 = vmatprep.subr.bf16.mxu0 0
    %243 = vmatpush1.bf16.msra.mxu0 0
    %244 = vmatprep.mubr.bf16.mxu0 0
    %245 = vmatmul.mubr.bf16.gmra.mrb[0].mxu0 %v210
    %v246 = vpop.f32.mrb[0].mxu0
    %v247 = vadd.f32 %v194, %v246
    %v248 = vpop.f32.mrb[0].mxu0
    %v249 = vpop.f32.mrb[0].mxu0
    %v250 = vadd.f32 %v194, %v249
    %v251 = vpop.f32.mrb[0].mxu0
    %252 = vdwg.mxu0
    %v253 = vmax.f32 %v247, 0.0
    %v254 = vmax.f32 %v250, 0.0
    %v255 = vld [vmem:[#allocation3] sm:$0xff]
    %v256 = vld [vmem:[#allocation3 + $0x8] sm:$0xff]
    %v257 = vpack.c.bf16 %v254, %v253
    %v258 = vld [vmem:[%s8] sm:$0xf]
    %v259 = vld [vmem:[%s8 + $0x4] sm:$0xf]
    %v260 = vld [vmem:[%s8 + $0x8] sm:$0xf]
    %v261 = vld [vmem:[%s8 + $0xc] sm:$0xf]
    %v262 = vld [vmem:[%s8 + $0x10] sm:$0xf]
    %v263 = vld [vmem:[%s8 + $0x14] sm:$0xf]
    %v264 = vld [vmem:[%s8 + $0x18] sm:$0xf]
    %v265 = vld [vmem:[%s8 + $0x1c] sm:$0xf]
    %v274 = vunpack.c.l.b16 %v258
    %v275 = vunpack.c.l.b16 %v259
    %v276 = vunpack.c.l.b16 %v260
    %v277 = vunpack.c.l.b16 %v261
    %v278 = vunpack.c.l.b16 %v262
    %v279 = vunpack.c.l.b16 %v263
    %v280 = vunpack.c.l.b16 %v264
    %v281 = vunpack.c.l.b16 %v265
    %v282 = vpack.c.b16 %v275, %v274
    %v283 = vpack.c.b16 %v277, %v276
    %v284 = vpack.c.b16 %v279, %v278
    %v285 = vpack.c.b16 %v281, %v280
    %vm290 = vcmask 523264
    %v292 = vsel %vm290, %v257, 0
    %294 = vmatprep.subr.bf16.mxu0 0
    %295 = vmatpush1.bf16.msra.mxu0 %v282
    %296 = vmatprep.subr.bf16.mxu0 0
    %297 = vmatpush1.bf16.msra.mxu0 %v283
    %298 = vmatprep.subr.bf16.mxu0 0
    %299 = vmatpush1.bf16.msra.mxu0 %v284
    %300 = vmatprep.subr.bf16.mxu0 0
    %301 = vmatpush1.bf16.msra.mxu0 %v285
    %302 = vmatprep.subr.bf16.mxu0 0
    %303 = vmatpush1.bf16.msra.mxu0 0
    %304 = vmatprep.subr.bf16.mxu0 0
    %305 = vmatpush1.bf16.msra.mxu0 0
    %306 = vmatprep.subr.bf16.mxu0 0
    %307 = vmatpush1.bf16.msra.mxu0 0
    %308 = vmatprep.subr.bf16.mxu0 0
    %309 = vmatpush1.bf16.msra.mxu0 0
    %310 = vmatprep.subr.bf16.mxu0 0
    %311 = vmatpush1.bf16.msra.mxu0 0
    %312 = vmatprep.subr.bf16.mxu0 0
    %313 = vmatpush1.bf16.msra.mxu0 0
    %314 = vmatprep.subr.bf16.mxu0 0
    %315 = vmatpush1.bf16.msra.mxu0 0
    %316 = vmatprep.subr.bf16.mxu0 0
    %317 = vmatpush1.bf16.msra.mxu0 0
    %318 = vmatprep.subr.bf16.mxu0 0
    %319 = vmatpush1.bf16.msra.mxu0 0
    %320 = vmatprep.subr.bf16.mxu0 0
    %321 = vmatpush1.bf16.msra.mxu0 0
    %322 = vmatprep.subr.bf16.mxu0 0
    %323 = vmatpush1.bf16.msra.mxu0 0
    %324 = vmatprep.subr.bf16.mxu0 0
    %325 = vmatpush1.bf16.msra.mxu0 0
    %326 = vmatprep.mubr.bf16.mxu0 0
    %327 = vmatmul.mubr.bf16.gmra.mrb[0].mxu0 %v292
    %v328 = vpop.f32.mrb[0].mxu0
    %v329 = vadd.f32 0.0, %v328
    %v330 = vpop.f32.mrb[0].mxu0
    %v331 = vpop.f32.mrb[0].mxu0
    %v332 = vadd.f32 0.0, %v331
    %v333 = vpop.f32.mrb[0].mxu0
    %334 = vdwg.mxu0
    %v335 = vadd.f32 %v255, %v329
    %v336 = vadd.f32 %v256, %v332
    %337 = vst.msk [vmem:[#allocation3] sm:$0xff] %vm208, %v335
    %338 = vst.msk [vmem:[#allocation3 + $0x8] sm:$0xff] %vm208, %v336
    // Predicated region
    $region54: #{decoder_forward.11} parent=1 // pred_check
      %p339 = pneg %p43
    $region55: #{decoder_forward.11} parent=1 // pred_check_branch
      %341 = sbr.rel (%p339) target = $region57
    $region56: #{decoder_forward.11} parent=1 // pred_region
      %v342 = vld [vmem:[#allocation3] sm:$0xff]
      %v343 = vld [vmem:[#allocation3 + $0x8] sm:$0xff]
      %v344 = vld [vmem:[%s10] sm:$0x1]
      %v345 = vld [vmem:[%s11] sm:$0x1]
      %v346 = vsel %vm208, %v342, 0.0
      %347 = vadd.xlane.f32.xlu0 %v346
      %v348 = vpop.xlane.xlu0 %347
      %v349 = vsel %vm208, %v343, 0.0
      %350 = vadd.xlane.f32.xlu0 %v349
      %v351 = vpop.xlane.xlu0 %350
      %v352 = vrcp.pop 32.0
      %v353 = vmul.f32 %v348, %v352
      %v354 = vmul.f32 %v351, %v352
      %v355 = vsub.f32 %v342, %v353
      %v356 = vsub.f32 %v343, %v354
      %v357 = vmul.f32 %v355, %v355
      %v358 = vmul.f32 %v356, %v356
      %v359 = vsel %vm208, %v357, 0.0
      %360 = vadd.xlane.f32.xlu0 %v359
      %v361 = vpop.xlane.xlu0 %360
      %v362 = vsel %vm208, %v358, 0.0
      %363 = vadd.xlane.f32.xlu0 %v362
      %v364 = vpop.xlane.xlu0 %363
      %v365 = vmul.f32 %v361, %v352
      %v366 = vmul.f32 %v364, %v352
      %v367 = vadd.f32 %v365, 1e-05
      %v368 = vadd.f32 %v366, 1e-05
      %v369 = vrsqrt.pop %v367
      %v370 = vrsqrt.pop %v368
      %v371 = vmul.f32 %v355, %v369
      %v372 = vmul.f32 %v356, %v370
      %v374 = vlaneseq
      %v375 = vshrl.u32 %v374, 7
      %v376 = vsub.s32 0, %v375
      %v377 = vrot.slane %v344, %v376
      %v379 = vmul.f32 %v371, %v377
      %v380 = vmul.f32 %v372, %v377
      %v382 = vlaneseq
      %v383 = vshrl.u32 %v382, 7
      %v384 = vsub.s32 0, %v383
      %v385 = vrot.slane %v345, %v384
      %v387 = vadd.f32 %v379, %v385
      %v388 = vadd.f32 %v380, %v385
      %389 = vst.msk [vmem:[#allocation3] sm:$0xff] %vm208, %v387
      %390 = vst.msk [vmem:[#allocation3 + $0x8] sm:$0xff] %vm208, %v388
    $region57: #{decoder_forward.11} parent=1 // pred_fallthru
      _
    // Predicated region
    $region58: #{decoder_forward.11} parent=1 // pred_check
      _
    $region59: #{decoder_forward.11} parent=1 // pred_check_branch
      %392 = sbr.rel (0) target = $region61
    $region60: #{decoder_forward.11} parent=1 // pred_region
      %s394 = ssub.s32 256, 256
      %395 = vsyncadd [#allocation4], %s394
      %s396 = sshll.u32 [#allocation3], 4
      %s397 = int_to_ptr.vmem [resolvable:$true] %s396
      %402 = dma.vmem_to_hbm [thread:$0]  %s397, 256, %s12, [#allocation4], 128, 128, 8
    $region61: #{decoder_forward.11} parent=1 // pred_fallthru
      _
    // Predicated region
    $region62: #{decoder_forward.11} parent=1 // pred_check
      _
    $region63: #{decoder_forward.11} parent=1 // pred_check_branch
      %404 = sbr.rel (0) target = $region65
    $region64: #{decoder_forward.11} parent=1 // pred_region
      %405 = dma.done [#allocation4], 256
    $region65: #{decoder_forward.11} parent=1 // pred_fallthru
      _
    %406 = vsyncpa [#allocation4], 1

</llo_original>
